<compile_context>
chip_gen: v6e
topology: v6e:2x2x1
jax: 0.10.0
libtpu: 0.0.40
codegen_flags: <defaults>
</compile_context>

<pallas_src>
from math import sqrt

import numpy as np

import jax
import jax.numpy as jnp
from jax.experimental import pallas as pl
from jax.experimental.pallas import tpu as pltpu

# ---------------- model dimensions (small, consistent with the module) -------
B = 2            # batch
S = 8            # window_size (sequence length)
E = 32           # embed_dim
NUM_HEADS = 4    # attention_head_size
HEAD_DIM = E // NUM_HEADS
INTER = 4 * E    # intermediate_size
LN_EPS = 1e-5


def _layernorm(v, g, b):
    mu = jnp.mean(v, axis=-1, keepdims=True)
    var = jnp.mean((v - mu) ** 2, axis=-1, keepdims=True)
    return (v - mu) * jax.lax.rsqrt(var + LN_EPS) * g + b


def _gelu_exact(v):
    return 0.5 * v * (1.0 + jax.lax.erf(v * (1.0 / sqrt(2.0))))


def _tree_sum(parts):
    parts = list(parts)
    while len(parts) > 1:
        nxt = [parts[i] + parts[i + 1] for i in range(0, len(parts) - 1, 2)]
        if len(parts) % 2:
            nxt.append(parts[-1])
        parts = nxt
    return parts[0]


def encoder_layer_kernel(
    x_ref, attn_bias_ref, head_mask_ref,
    ln1_g_ref, ln1_b_ref,
    wqkv_ref, bqkv_ref,
    wo_ref, bo_ref,
    ln2_g_ref, ln2_b_ref,
    w1_ref, b1_ref, w2_ref, b2_ref,
    o_ref,
):
    # x_ref: (B*S, E) -- batch folded into rows; row-wise ops are exact under
    # this folding, attention keeps batches separate via the additive bias.
    x = x_ref[...]                                               # (BS, E) f32

    # ---- sublayer 1: multi-head self-attention on LayerNorm(x) ----
    h = _layernorm(x, ln1_g_ref[...], ln1_b_ref[...])            # (BS, E)

    # Fused QKV projection: one (BS,E)x(E,3E) matmul + one bias add.
    qkv = (jnp.dot(h, wqkv_ref[...], preferred_element_type=jnp.float32)
           + bqkv_ref[...])                                      # (BS, 3E)
    q = qkv[:, 0 * E:1 * E] * (1.0 / sqrt(HEAD_DIM))             # scale folded once
    k = qkv[:, 1 * E:2 * E]
    v = qkv[:, 2 * E:3 * E]

    hm = head_mask_ref[...]                                      # (H, E) 0/1
    bias = attn_bias_ref[...]                                    # (BS, BS) 0/-1e30

    # Per-head lane-masked full-width attention: no (H, BS, 8) relayouts.
    ctx_parts = []
    for hd in range(NUM_HEADS):
        mask_h = hm[hd:hd + 1, :]                                # (1, E)
        # (q * mask_h) . k^T contracts all 32 lanes, but only head-h lanes are
        # nonzero => exactly q_h @ k_h^T.  Contraction on last dim of both
        # operands (no explicit transpose materialized).
        s = jax.lax.dot_general(q * mask_h, k, (((1,), (1,)), ((), ())),
                                preferred_element_type=jnp.float32)  # (BS, BS)
        s = s + bias                                             # block-diag mask
        m = jnp.max(s, axis=-1, keepdims=True)
        p = jnp.exp(s - m)
        w = p * pl.reciprocal(jnp.sum(p, axis=-1, keepdims=True),
                              approx=True)                       # EUP reciprocal
        # Nonzero only on head-h lanes of the (BS, E) result.
        ctx_parts.append(jnp.dot(w, v * mask_h,
                                 preferred_element_type=jnp.float32))

    # Disjoint lane supports per head -> tree add rebuilds the full context.
    ctx = _tree_sum(ctx_parts)                                   # (BS, E)
    attn = (jnp.dot(ctx, wo_ref[...], preferred_element_type=jnp.float32)
            + bo_ref[...])                                       # single K=32 matmul
    x1 = x + attn                                                # residual 1

    # ---- sublayer 2: feed-forward on LayerNorm(x1) ----
    h2 = _layernorm(x1, ln2_g_ref[...], ln2_b_ref[...])
    ff = jnp.dot(h2, w1_ref[...], preferred_element_type=jnp.float32) + b1_ref[...]
    ff = _gelu_exact(ff)
    ff = jnp.dot(ff, w2_ref[...], preferred_element_type=jnp.float32) + b2_ref[...]
    # dropout: identity in eval/inference mode

    o_ref[...] = (x1 + ff).astype(o_ref.dtype)


def transformer_encoder_layer(x, params):
    bsz, seq, emb = x.shape
    x2 = x.reshape(bsz * seq, emb)            # wrapper-side layout plumbing only

    # Fused QKV weights/biases (wrapper-side concatenation, done once).
    wqkv = jnp.concatenate([params["wq"], params["wk"], params["wv"]], axis=1)  # (E, 3E)
    bqkv = jnp.concatenate([params["bq"], params["bk"], params["bv"]], axis=1)  # (1, 3E)

    # Compile-time constants: block-diagonal additive attention bias (keeps each
    # batch attending within itself) and per-head 0/1 lane masks.
    row = np.arange(bsz * seq) // seq
    attn_bias = jnp.asarray(
        np.where(row[:, None] == row[None, :], 0.0, -1e30), dtype=jnp.float32)
    head_mask = jnp.asarray(
        np.kron(np.eye(NUM_HEADS), np.ones((1, HEAD_DIM))), dtype=jnp.float32)

    args = [x2, attn_bias, head_mask,
            params["ln1_g"], params["ln1_b"],
            wqkv, bqkv,
            params["wo"], params["bo"],
            params["ln2_g"], params["ln2_b"],
            params["w1"], params["b1"], params["w2"], params["b2"]]

    vmem_spec = pl.BlockSpec(memory_space=pltpu.MemorySpace.VMEM)
    out2 = pl.pallas_call(
        encoder_layer_kernel,
        out_shape=jax.ShapeDtypeStruct((bsz * seq, emb), x.dtype),
        in_specs=[vmem_spec] * len(args),
        out_specs=vmem_spec,
    )(*args)
    return out2.reshape(bsz, seq, emb)


# ---------------- pure-JAX reference (for sanity check) ----------------------
def reference_forward(x, p):
    def ln(v, g, b):
        mu = jnp.mean(v, axis=-1, keepdims=True)
        var = jnp.mean((v - mu) ** 2, axis=-1, keepdims=True)
        return (v - mu) / jnp.sqrt(var + LN_EPS) * g + b

    h = ln(x, p["ln1_g"], p["ln1_b"])
    q = h @ p["wq"] + p["bq"]
    k = h @ p["wk"] + p["bk"]
    v = h @ p["wv"] + p["bv"]
    outs = []
    for hd in range(NUM_HEADS):
        lo = hd * HEAD_DIM
        qh, kh, vh = q[..., lo:lo + HEAD_DIM], k[..., lo:lo + HEAD_DIM], v[..., lo:lo + HEAD_DIM]
        sc = jnp.einsum("bsd,btd->bst", qh, kh) / sqrt(HEAD_DIM)
        w = jax.nn.softmax(sc, axis=-1)
        outs.append(jnp.einsum("bst,btd->bsd", w, vh))
    ctx = jnp.concatenate(outs, axis=-1)
    attn = ctx @ p["wo"] + p["bo"]
    x1 = x + attn
    h2 = ln(x1, p["ln2_g"], p["ln2_b"])
    ff = h2 @ p["w1"] + p["b1"]
    ff = 0.5 * ff * (1.0 + jax.lax.erf(ff / jnp.sqrt(2.0)))
    ff = ff @ p["w2"] + p["b2"]
    return x1 + ff


def init_params(key):
    ks = jax.random.split(key, 12)
    s = 0.02
    return {
        "ln1_g": jnp.ones((1, E), jnp.float32),
        "ln1_b": jnp.zeros((1, E), jnp.float32),
        "wq": s * jax.random.normal(ks[0], (E, E), jnp.float32),
        "bq": s * jax.random.normal(ks[1], (1, E), jnp.float32),
        "wk": s * jax.random.normal(ks[2], (E, E), jnp.float32),
        "bk": s * jax.random.normal(ks[3], (1, E), jnp.float32),
        "wv": s * jax.random.normal(ks[4], (E, E), jnp.float32),
        "bv": s * jax.random.normal(ks[5], (1, E), jnp.float32),
        "wo": s * jax.random.normal(ks[6], (E, E), jnp.float32),
        "bo": s * jax.random.normal(ks[7], (1, E), jnp.float32),
        "ln2_g": jnp.ones((1, E), jnp.float32),
        "ln2_b": jnp.zeros((1, E), jnp.float32),
        "w1": s * jax.random.normal(ks[8], (E, INTER), jnp.float32),
        "b1": s * jax.random.normal(ks[9], (1, INTER), jnp.float32),
        "w2": s * jax.random.normal(ks[10], (INTER, E), jnp.float32),
        "b2": s * jax.random.normal(ks[11], (1, E), jnp.float32),
    }


if __name__ == "__main__":
    key = jax.random.PRNGKey(0)
    kx, kp = jax.random.split(key)
    x = jax.random.normal(kx, (B, S, E), jnp.float32)
    params = init_params(kp)

    out = transformer_encoder_layer(x, params)
    out = jax.block_until_ready(out)

    ref = reference_forward(x, params)
    assert out.shape == (B, S, E)
    # Slightly relaxed tolerance vs exact division: softmax denominator uses the
    # hardware approximate reciprocal (EUP), everything else is exact f32.
    assert jnp.max(jnp.abs(out - ref)) < 2e-4, "mismatch vs reference"
    print("KERNEL_OK")
</pallas_src>

<mosaic_0001>
module attributes {stable_mosaic.version = 11 : i64} {
  func.func @encoder_layer_kernel(%arg0: memref<16x32xf32, #tpu.memory_space<vmem>>, %arg1: memref<16x16xf32, #tpu.memory_space<vmem>>, %arg2: memref<4x32xf32, #tpu.memory_space<vmem>>, %arg3: memref<1x32xf32, #tpu.memory_space<vmem>>, %arg4: memref<1x32xf32, #tpu.memory_space<vmem>>, %arg5: memref<32x96xf32, #tpu.memory_space<vmem>>, %arg6: memref<1x96xf32, #tpu.memory_space<vmem>>, %arg7: memref<32x32xf32, #tpu.memory_space<vmem>>, %arg8: memref<1x32xf32, #tpu.memory_space<vmem>>, %arg9: memref<1x32xf32, #tpu.memory_space<vmem>>, %arg10: memref<1x32xf32, #tpu.memory_space<vmem>>, %arg11: memref<32x128xf32, #tpu.memory_space<vmem>>, %arg12: memref<1x128xf32, #tpu.memory_space<vmem>>, %arg13: memref<128x32xf32, #tpu.memory_space<vmem>>, %arg14: memref<1x32xf32, #tpu.memory_space<vmem>>, %arg15: memref<16x32xf32, #tpu.memory_space<vmem>>) attributes {dimension_semantics = [], scalar_prefetch = 0 : i64, scratch_operands = 0 : i64, tpu.core_type = #tpu.core_type<tc>} {
    %c0 = arith.constant 0 : index
    %c0_0 = arith.constant 0 : index
    %0 = vector.load %arg0[%c0, %c0_0] : memref<16x32xf32, #tpu.memory_space<vmem>>, vector<16x32xf32>
    %c0_1 = arith.constant 0 : index
    %c0_2 = arith.constant 0 : index
    %1 = vector.load %arg3[%c0_1, %c0_2] : memref<1x32xf32, #tpu.memory_space<vmem>>, vector<1x32xf32>
    %c0_3 = arith.constant 0 : index
    %c0_4 = arith.constant 0 : index
    %2 = vector.load %arg4[%c0_3, %c0_4] : memref<1x32xf32, #tpu.memory_space<vmem>>, vector<1x32xf32>
    %cst = arith.constant dense<0.000000e+00> : vector<16xf32>
    %3 = vector.multi_reduction <add>, %0, %cst [1] : vector<16x32xf32> to vector<16xf32>
    %4 = vector.shape_cast %3 : vector<16xf32> to vector<16x1xf32>
    %cst_5 = arith.constant 3.200000e+01 : f32
    %5 = vector.broadcast %cst_5 : f32 to vector<16x1xf32>
    %6 = arith.divf %4, %5 : vector<16x1xf32>
    %7 = vector.broadcast %6 : vector<16x1xf32> to vector<16x32xf32>
    %8 = arith.subf %0, %7 : vector<16x32xf32>
    %9 = arith.mulf %8, %8 : vector<16x32xf32>
    %cst_6 = arith.constant dense<0.000000e+00> : vector<16xf32>
    %10 = vector.multi_reduction <add>, %9, %cst_6 [1] : vector<16x32xf32> to vector<16xf32>
    %11 = vector.shape_cast %10 : vector<16xf32> to vector<16x1xf32>
    %cst_7 = arith.constant 3.200000e+01 : f32
    %12 = vector.broadcast %cst_7 : f32 to vector<16x1xf32>
    %13 = arith.divf %11, %12 : vector<16x1xf32>
    %14 = vector.broadcast %6 : vector<16x1xf32> to vector<16x32xf32>
    %15 = arith.subf %0, %14 : vector<16x32xf32>
    %cst_8 = arith.constant 9.99999974E-6 : f32
    %16 = vector.broadcast %cst_8 : f32 to vector<16x1xf32>
    %17 = arith.addf %13, %16 : vector<16x1xf32>
    %18 = math.rsqrt %17 : vector<16x1xf32>
    %19 = vector.broadcast %18 : vector<16x1xf32> to vector<16x32xf32>
    %20 = arith.mulf %15, %19 : vector<16x32xf32>
    %21 = vector.broadcast %1 : vector<1x32xf32> to vector<16x32xf32>
    %22 = arith.mulf %20, %21 : vector<16x32xf32>
    %23 = vector.broadcast %2 : vector<1x32xf32> to vector<16x32xf32>
    %24 = arith.addf %22, %23 : vector<16x32xf32>
    %c0_9 = arith.constant 0 : index
    %c0_10 = arith.constant 0 : index
    %25 = vector.load %arg5[%c0_9, %c0_10] : memref<32x96xf32, #tpu.memory_space<vmem>>, vector<32x96xf32>
    %cst_11 = arith.constant dense<0.000000e+00> : vector<16x96xf32>
    %26 = tpu.matmul %24, %25, %cst_11 {dimension_numbers = #tpu.dot_dimension_numbers<[1], [0], [0], [1], [0, 0, 1, 1], [], []>} : vector<16x32xf32>, vector<32x96xf32>, vector<16x96xf32> -> vector<16x96xf32>
    %c0_12 = arith.constant 0 : index
    %c0_13 = arith.constant 0 : index
    %27 = vector.load %arg6[%c0_12, %c0_13] : memref<1x96xf32, #tpu.memory_space<vmem>>, vector<1x96xf32>
    %28 = vector.broadcast %27 : vector<1x96xf32> to vector<16x96xf32>
    %29 = arith.addf %26, %28 : vector<16x96xf32>
    %30 = vector.extract_strided_slice %29 {offsets = [0, 0], sizes = [16, 32], strides = [1, 1]} : vector<16x96xf32> to vector<16x32xf32>
    %cst_14 = arith.constant 0.353553385 : f32
    %31 = vector.broadcast %cst_14 : f32 to vector<16x32xf32>
    %32 = arith.mulf %30, %31 : vector<16x32xf32>
    %33 = vector.extract_strided_slice %29 {offsets = [0, 32], sizes = [16, 32], strides = [1, 1]} : vector<16x96xf32> to vector<16x32xf32>
    %34 = vector.extract_strided_slice %29 {offsets = [0, 64], sizes = [16, 32], strides = [1, 1]} : vector<16x96xf32> to vector<16x32xf32>
    %c0_15 = arith.constant 0 : index
    %c0_16 = arith.constant 0 : index
    %35 = vector.load %arg2[%c0_15, %c0_16] : memref<4x32xf32, #tpu.memory_space<vmem>>, vector<4x32xf32>
    %c0_17 = arith.constant 0 : index
    %c0_18 = arith.constant 0 : index
    %36 = vector.load %arg1[%c0_17, %c0_18] : memref<16x16xf32, #tpu.memory_space<vmem>>, vector<16x16xf32>
    %37 = vector.extract_strided_slice %35 {offsets = [0, 0], sizes = [1, 32], strides = [1, 1]} : vector<4x32xf32> to vector<1x32xf32>
    %38 = vector.broadcast %37 : vector<1x32xf32> to vector<16x32xf32>
    %39 = arith.mulf %32, %38 : vector<16x32xf32>
    %cst_19 = arith.constant dense<0.000000e+00> : vector<16x16xf32>
    %40 = tpu.matmul %39, %33, %cst_19 {dimension_numbers = #tpu.dot_dimension_numbers<[1], [1], [0], [0], [0, 0, 1, 0], [], []>} : vector<16x32xf32>, vector<16x32xf32>, vector<16x16xf32> -> vector<16x16xf32>
    %41 = arith.addf %40, %36 : vector<16x16xf32>
    %cst_20 = arith.constant dense<0xFF800000> : vector<16xf32>
    %42 = vector.multi_reduction <maximumf>, %41, %cst_20 [1] : vector<16x16xf32> to vector<16xf32>
    %43 = vector.shape_cast %42 : vector<16xf32> to vector<16x1xf32>
    %44 = vector.broadcast %43 : vector<16x1xf32> to vector<16x16xf32>
    %45 = arith.subf %41, %44 : vector<16x16xf32>
    %46 = math.exp %45 : vector<16x16xf32>
    %cst_21 = arith.constant dense<0.000000e+00> : vector<16xf32>
    %47 = vector.multi_reduction <add>, %46, %cst_21 [1] : vector<16x16xf32> to vector<16xf32>
    %48 = vector.shape_cast %47 : vector<16xf32> to vector<16x1xf32>
    %49 = tpu.reciprocal %48 {approx = true} : vector<16x1xf32> -> vector<16x1xf32>
    %50 = vector.broadcast %49 : vector<16x1xf32> to vector<16x16xf32>
    %51 = arith.mulf %46, %50 : vector<16x16xf32>
    %52 = vector.broadcast %37 : vector<1x32xf32> to vector<16x32xf32>
    %53 = arith.mulf %34, %52 : vector<16x32xf32>
    %cst_22 = arith.constant dense<0.000000e+00> : vector<16x32xf32>
    %54 = tpu.matmul %51, %53, %cst_22 {dimension_numbers = #tpu.dot_dimension_numbers<[1], [0], [0], [1], [0, 0, 1, 1], [], []>} : vector<16x16xf32>, vector<16x32xf32>, vector<16x32xf32> -> vector<16x32xf32>
    %55 = vector.extract_strided_slice %35 {offsets = [1, 0], sizes = [1, 32], strides = [1, 1]} : vector<4x32xf32> to vector<1x32xf32>
    %56 = vector.broadcast %55 : vector<1x32xf32> to vector<16x32xf32>
    %57 = arith.mulf %32, %56 : vector<16x32xf32>
    %cst_23 = arith.constant dense<0.000000e+00> : vector<16x16xf32>
    %58 = tpu.matmul %57, %33, %cst_23 {dimension_numbers = #tpu.dot_dimension_numbers<[1], [1], [0], [0], [0, 0, 1, 0], [], []>} : vector<16x32xf32>, vector<16x32xf32>, vector<16x16xf32> -> vector<16x16xf32>
    %59 = arith.addf %58, %36 : vector<16x16xf32>
    %cst_24 = arith.constant dense<0xFF800000> : vector<16xf32>
    %60 = vector.multi_reduction <maximumf>, %59, %cst_24 [1] : vector<16x16xf32> to vector<16xf32>
    %61 = vector.shape_cast %60 : vector<16xf32> to vector<16x1xf32>
    %62 = vector.broadcast %61 : vector<16x1xf32> to vector<16x16xf32>
    %63 = arith.subf %59, %62 : vector<16x16xf32>
    %64 = math.exp %63 : vector<16x16xf32>
    %cst_25 = arith.constant dense<0.000000e+00> : vector<16xf32>
    %65 = vector.multi_reduction <add>, %64, %cst_25 [1] : vector<16x16xf32> to vector<16xf32>
    %66 = vector.shape_cast %65 : vector<16xf32> to vector<16x1xf32>
    %67 = tpu.reciprocal %66 {approx = true} : vector<16x1xf32> -> vector<16x1xf32>
    %68 = vector.broadcast %67 : vector<16x1xf32> to vector<16x16xf32>
    %69 = arith.mulf %64, %68 : vector<16x16xf32>
    %70 = vector.broadcast %55 : vector<1x32xf32> to vector<16x32xf32>
    %71 = arith.mulf %34, %70 : vector<16x32xf32>
    %cst_26 = arith.constant dense<0.000000e+00> : vector<16x32xf32>
    %72 = tpu.matmul %69, %71, %cst_26 {dimension_numbers = #tpu.dot_dimension_numbers<[1], [0], [0], [1], [0, 0, 1, 1], [], []>} : vector<16x16xf32>, vector<16x32xf32>, vector<16x32xf32> -> vector<16x32xf32>
    %73 = vector.extract_strided_slice %35 {offsets = [2, 0], sizes = [1, 32], strides = [1, 1]} : vector<4x32xf32> to vector<1x32xf32>
    %74 = vector.broadcast %73 : vector<1x32xf32> to vector<16x32xf32>
    %75 = arith.mulf %32, %74 : vector<16x32xf32>
    %cst_27 = arith.constant dense<0.000000e+00> : vector<16x16xf32>
    %76 = tpu.matmul %75, %33, %cst_27 {dimension_numbers = #tpu.dot_dimension_numbers<[1], [1], [0], [0], [0, 0, 1, 0], [], []>} : vector<16x32xf32>, vector<16x32xf32>, vector<16x16xf32> -> vector<16x16xf32>
    %77 = arith.addf %76, %36 : vector<16x16xf32>
    %cst_28 = arith.constant dense<0xFF800000> : vector<16xf32>
    %78 = vector.multi_reduction <maximumf>, %77, %cst_28 [1] : vector<16x16xf32> to vector<16xf32>
    %79 = vector.shape_cast %78 : vector<16xf32> to vector<16x1xf32>
    %80 = vector.broadcast %79 : vector<16x1xf32> to vector<16x16xf32>
    %81 = arith.subf %77, %80 : vector<16x16xf32>
    %82 = math.exp %81 : vector<16x16xf32>
    %cst_29 = arith.constant dense<0.000000e+00> : vector<16xf32>
    %83 = vector.multi_reduction <add>, %82, %cst_29 [1] : vector<16x16xf32> to vector<16xf32>
    %84 = vector.shape_cast %83 : vector<16xf32> to vector<16x1xf32>
    %85 = tpu.reciprocal %84 {approx = true} : vector<16x1xf32> -> vector<16x1xf32>
    %86 = vector.broadcast %85 : vector<16x1xf32> to vector<16x16xf32>
    %87 = arith.mulf %82, %86 : vector<16x16xf32>
    %88 = vector.broadcast %73 : vector<1x32xf32> to vector<16x32xf32>
    %89 = arith.mulf %34, %88 : vector<16x32xf32>
    %cst_30 = arith.constant dense<0.000000e+00> : vector<16x32xf32>
    %90 = tpu.matmul %87, %89, %cst_30 {dimension_numbers = #tpu.dot_dimension_numbers<[1], [0], [0], [1], [0, 0, 1, 1], [], []>} : vector<16x16xf32>, vector<16x32xf32>, vector<16x32xf32> -> vector<16x32xf32>
    %91 = vector.extract_strided_slice %35 {offsets = [3, 0], sizes = [1, 32], strides = [1, 1]} : vector<4x32xf32> to vector<1x32xf32>
    %92 = vector.broadcast %91 : vector<1x32xf32> to vector<16x32xf32>
    %93 = arith.mulf %32, %92 : vector<16x32xf32>
    %cst_31 = arith.constant dense<0.000000e+00> : vector<16x16xf32>
    %94 = tpu.matmul %93, %33, %cst_31 {dimension_numbers = #tpu.dot_dimension_numbers<[1], [1], [0], [0], [0, 0, 1, 0], [], []>} : vector<16x32xf32>, vector<16x32xf32>, vector<16x16xf32> -> vector<16x16xf32>
    %95 = arith.addf %94, %36 : vector<16x16xf32>
    %cst_32 = arith.constant dense<0xFF800000> : vector<16xf32>
    %96 = vector.multi_reduction <maximumf>, %95, %cst_32 [1] : vector<16x16xf32> to vector<16xf32>
    %97 = vector.shape_cast %96 : vector<16xf32> to vector<16x1xf32>
    %98 = vector.broadcast %97 : vector<16x1xf32> to vector<16x16xf32>
    %99 = arith.subf %95, %98 : vector<16x16xf32>
    %100 = math.exp %99 : vector<16x16xf32>
    %cst_33 = arith.constant dense<0.000000e+00> : vector<16xf32>
    %101 = vector.multi_reduction <add>, %100, %cst_33 [1] : vector<16x16xf32> to vector<16xf32>
    %102 = vector.shape_cast %101 : vector<16xf32> to vector<16x1xf32>
    %103 = tpu.reciprocal %102 {approx = true} : vector<16x1xf32> -> vector<16x1xf32>
    %104 = vector.broadcast %103 : vector<16x1xf32> to vector<16x16xf32>
    %105 = arith.mulf %100, %104 : vector<16x16xf32>
    %106 = vector.broadcast %91 : vector<1x32xf32> to vector<16x32xf32>
    %107 = arith.mulf %34, %106 : vector<16x32xf32>
    %cst_34 = arith.constant dense<0.000000e+00> : vector<16x32xf32>
    %108 = tpu.matmul %105, %107, %cst_34 {dimension_numbers = #tpu.dot_dimension_numbers<[1], [0], [0], [1], [0, 0, 1, 1], [], []>} : vector<16x16xf32>, vector<16x32xf32>, vector<16x32xf32> -> vector<16x32xf32>
    %109 = arith.addf %54, %72 : vector<16x32xf32>
    %110 = arith.addf %90, %108 : vector<16x32xf32>
    %111 = arith.addf %109, %110 : vector<16x32xf32>
    %c0_35 = arith.constant 0 : index
    %c0_36 = arith.constant 0 : index
    %112 = vector.load %arg7[%c0_35, %c0_36] : memref<32x32xf32, #tpu.memory_space<vmem>>, vector<32x32xf32>
    %cst_37 = arith.constant dense<0.000000e+00> : vector<16x32xf32>
    %113 = tpu.matmul %111, %112, %cst_37 {dimension_numbers = #tpu.dot_dimension_numbers<[1], [0], [0], [1], [0, 0, 1, 1], [], []>} : vector<16x32xf32>, vector<32x32xf32>, vector<16x32xf32> -> vector<16x32xf32>
    %c0_38 = arith.constant 0 : index
    %c0_39 = arith.constant 0 : index
    %114 = vector.load %arg8[%c0_38, %c0_39] : memref<1x32xf32, #tpu.memory_space<vmem>>, vector<1x32xf32>
    %115 = vector.broadcast %114 : vector<1x32xf32> to vector<16x32xf32>
    %116 = arith.addf %113, %115 : vector<16x32xf32>
    %117 = arith.addf %0, %116 : vector<16x32xf32>
    %c0_40 = arith.constant 0 : index
    %c0_41 = arith.constant 0 : index
    %118 = vector.load %arg9[%c0_40, %c0_41] : memref<1x32xf32, #tpu.memory_space<vmem>>, vector<1x32xf32>
    %c0_42 = arith.constant 0 : index
    %c0_43 = arith.constant 0 : index
    %119 = vector.load %arg10[%c0_42, %c0_43] : memref<1x32xf32, #tpu.memory_space<vmem>>, vector<1x32xf32>
    %cst_44 = arith.constant dense<0.000000e+00> : vector<16xf32>
    %120 = vector.multi_reduction <add>, %117, %cst_44 [1] : vector<16x32xf32> to vector<16xf32>
    %121 = vector.shape_cast %120 : vector<16xf32> to vector<16x1xf32>
    %cst_45 = arith.constant 3.200000e+01 : f32
    %122 = vector.broadcast %cst_45 : f32 to vector<16x1xf32>
    %123 = arith.divf %121, %122 : vector<16x1xf32>
    %124 = vector.broadcast %123 : vector<16x1xf32> to vector<16x32xf32>
    %125 = arith.subf %117, %124 : vector<16x32xf32>
    %126 = arith.mulf %125, %125 : vector<16x32xf32>
    %cst_46 = arith.constant dense<0.000000e+00> : vector<16xf32>
    %127 = vector.multi_reduction <add>, %126, %cst_46 [1] : vector<16x32xf32> to vector<16xf32>
    %128 = vector.shape_cast %127 : vector<16xf32> to vector<16x1xf32>
    %cst_47 = arith.constant 3.200000e+01 : f32
    %129 = vector.broadcast %cst_47 : f32 to vector<16x1xf32>
    %130 = arith.divf %128, %129 : vector<16x1xf32>
    %131 = vector.broadcast %123 : vector<16x1xf32> to vector<16x32xf32>
    %132 = arith.subf %117, %131 : vector<16x32xf32>
    %cst_48 = arith.constant 9.99999974E-6 : f32
    %133 = vector.broadcast %cst_48 : f32 to vector<16x1xf32>
    %134 = arith.addf %130, %133 : vector<16x1xf32>
    %135 = math.rsqrt %134 : vector<16x1xf32>
    %136 = vector.broadcast %135 : vector<16x1xf32> to vector<16x32xf32>
    %137 = arith.mulf %132, %136 : vector<16x32xf32>
    %138 = vector.broadcast %118 : vector<1x32xf32> to vector<16x32xf32>
    %139 = arith.mulf %137, %138 : vector<16x32xf32>
    %140 = vector.broadcast %119 : vector<1x32xf32> to vector<16x32xf32>
    %141 = arith.addf %139, %140 : vector<16x32xf32>
    %c0_49 = arith.constant 0 : index
    %c0_50 = arith.constant 0 : index
    %142 = vector.load %arg11[%c0_49, %c0_50] : memref<32x128xf32, #tpu.memory_space<vmem>>, vector<32x128xf32>
    %cst_51 = arith.constant dense<0.000000e+00> : vector<16x128xf32>
    %143 = tpu.matmul %141, %142, %cst_51 {dimension_numbers = #tpu.dot_dimension_numbers<[1], [0], [0], [1], [0, 0, 1, 1], [], []>} : vector<16x32xf32>, vector<32x128xf32>, vector<16x128xf32> -> vector<16x128xf32>
    %c0_52 = arith.constant 0 : index
    %c0_53 = arith.constant 0 : index
    %144 = vector.load %arg12[%c0_52, %c0_53] : memref<1x128xf32, #tpu.memory_space<vmem>>, vector<1x128xf32>
    %145 = vector.broadcast %144 : vector<1x128xf32> to vector<16x128xf32>
    %146 = arith.addf %143, %145 : vector<16x128xf32>
    %cst_54 = arith.constant 5.000000e-01 : f32
    %147 = vector.broadcast %cst_54 : f32 to vector<16x128xf32>
    %148 = arith.mulf %147, %146 : vector<16x128xf32>
    %cst_55 = arith.constant 0.707106769 : f32
    %149 = vector.broadcast %cst_55 : f32 to vector<16x128xf32>
    %150 = arith.mulf %146, %149 : vector<16x128xf32>
    %151 = math.erf %150 : vector<16x128xf32>
    %cst_56 = arith.constant 1.000000e+00 : f32
    %152 = vector.broadcast %cst_56 : f32 to vector<16x128xf32>
    %153 = arith.addf %152, %151 : vector<16x128xf32>
    %154 = arith.mulf %148, %153 : vector<16x128xf32>
    %c0_57 = arith.constant 0 : index
    %c0_58 = arith.constant 0 : index
    %155 = vector.load %arg13[%c0_57, %c0_58] : memref<128x32xf32, #tpu.memory_space<vmem>>, vector<128x32xf32>
    %cst_59 = arith.constant dense<0.000000e+00> : vector<16x32xf32>
    %156 = tpu.matmul %154, %155, %cst_59 {dimension_numbers = #tpu.dot_dimension_numbers<[1], [0], [0], [1], [0, 0, 1, 1], [], []>} : vector<16x128xf32>, vector<128x32xf32>, vector<16x32xf32> -> vector<16x32xf32>
    %c0_60 = arith.constant 0 : index
    %c0_61 = arith.constant 0 : index
    %157 = vector.load %arg14[%c0_60, %c0_61] : memref<1x32xf32, #tpu.memory_space<vmem>>, vector<1x32xf32>
    %158 = vector.broadcast %157 : vector<1x32xf32> to vector<16x32xf32>
    %159 = arith.addf %156, %158 : vector<16x32xf32>
    %160 = arith.addf %117, %159 : vector<16x32xf32>
    %c0_62 = arith.constant 0 : index
    %c0_63 = arith.constant 0 : index
    %161 = vector.load %arg15[%c0_62, %c0_63] : memref<16x32xf32, #tpu.memory_space<vmem>>, vector<16x32xf32>
    tpu.vector_store %arg15[%c0_62, %c0_63], %160 {strides = array<i32>} : memref<16x32xf32, #tpu.memory_space<vmem>>, vector<16x32xf32>,
    return
  }
}

</mosaic_0001>

<llo_original>
// kernel: tpu_custom_call.1
$region0: #{tpu_custom_call.1}
  #allocation0 [shape = 'u32[]', space=smem, size = 0x4, offset = 0x4, fixed_abs, tag = 'smem constant byte address 0x4 - core index']
  #allocation1 [shape = 'u32[144,128]{1,0:T(1,128)}', space=vmem, size = 0x12000, scoped, tag = 'internal scratch']
  %s0 = inlined_call_operand.vmem [shape: f32[16,32], index: 0, kind: input, shape index: {}]
  %s1 = inlined_call_operand.vmem [shape: f32[16,16], index: 1, kind: input, shape index: {}]
  %s2 = inlined_call_operand.vmem [shape: f32[4,32], index: 2, kind: input, shape index: {}]
  %s3 = inlined_call_operand.vmem [shape: f32[1,32], index: 3, kind: input, shape index: {}]
  %s4 = inlined_call_operand.vmem [shape: f32[1,32], index: 4, kind: input, shape index: {}]
  %s5 = inlined_call_operand.vmem [shape: f32[32,96], index: 5, kind: input, shape index: {}]
  %s6 = inlined_call_operand.vmem [shape: f32[1,96], index: 6, kind: input, shape index: {}]
  %s7 = inlined_call_operand.vmem [shape: f32[32,32], index: 7, kind: input, shape index: {}]
  %s8 = inlined_call_operand.vmem [shape: f32[1,32], index: 8, kind: input, shape index: {}]
  %s9 = inlined_call_operand.vmem [shape: f32[1,32], index: 9, kind: input, shape index: {}]
  %s10 = inlined_call_operand.vmem [shape: f32[1,32], index: 10, kind: input, shape index: {}]
  %s11 = inlined_call_operand.vmem [shape: f32[32,128], index: 11, kind: input, shape index: {}]
  %s12 = inlined_call_operand.vmem [shape: f32[1,128], index: 12, kind: input, shape index: {}]
  %s13 = inlined_call_operand.vmem [shape: f32[128,32], index: 13, kind: input, shape index: {}]
  %s14 = inlined_call_operand.vmem [shape: f32[1,32], index: 14, kind: input, shape index: {}]
  %s15 = inlined_call_operand.hbm [shape: f32[16,32], index: 15, kind: output, shape index: {}]
  %s16 = sld [smem:[#allocation0]]
  $region70: #{tpu_custom_call.1} parent=0
    _
  %s18 = ssub.s32 1, %s16
  %s19 = scalar_select 0, %s18, %s16
  $region1: #{tpu_custom_call.1} parent=0
    #allocation2 [shape = 'u8[8192]{0}', space=vmem, size = 0x2000, scoped, tag = 'output window, operand 0, single buffered']
    #allocation3 [shape = 's32[1]{0}', space=sflag, size = 0x4, scoped, tag = 'scoped memory for tpu_custom_call.1']
    %20 = vsyncpa [#allocation3], 0
    // Predicated region
    $region2: #{tpu_custom_call.1} parent=1 // pred_check
      _
    $region3: #{tpu_custom_call.1} parent=1 // pred_check_branch
      %22 = sbr.rel (0) target = $region5
    $region4: #{tpu_custom_call.1} parent=1 // pred_region
      _
    $region5: #{tpu_custom_call.1} parent=1 // pred_fallthru
      _
    // Predicated region
    $region6: #{tpu_custom_call.1} parent=1 // pred_check
      _
    $region7: #{tpu_custom_call.1} parent=1 // pred_check_branch
      %24 = sbr.rel (0) target = $region9
    $region8: #{tpu_custom_call.1} parent=1 // pred_region
      _
    $region9: #{tpu_custom_call.1} parent=1 // pred_fallthru
      _
    // Predicated region
    $region10: #{tpu_custom_call.1} parent=1 // pred_check
      _
    $region11: #{tpu_custom_call.1} parent=1 // pred_check_branch
      %26 = sbr.rel (0) target = $region13
    $region12: #{tpu_custom_call.1} parent=1 // pred_region
      _
    $region13: #{tpu_custom_call.1} parent=1 // pred_fallthru
      _
    // Predicated region
    $region14: #{tpu_custom_call.1} parent=1 // pred_check
      _
    $region15: #{tpu_custom_call.1} parent=1 // pred_check_branch
      %28 = sbr.rel (0) target = $region17
    $region16: #{tpu_custom_call.1} parent=1 // pred_region
      _
    $region17: #{tpu_custom_call.1} parent=1 // pred_fallthru
      _
    // Predicated region
    $region18: #{tpu_custom_call.1} parent=1 // pred_check
      _
    $region19: #{tpu_custom_call.1} parent=1 // pred_check_branch
      %30 = sbr.rel (0) target = $region21
    $region20: #{tpu_custom_call.1} parent=1 // pred_region
      _
    $region21: #{tpu_custom_call.1} parent=1 // pred_fallthru
      _
    // Predicated region
    $region22: #{tpu_custom_call.1} parent=1 // pred_check
      _
    $region23: #{tpu_custom_call.1} parent=1 // pred_check_branch
      %32 = sbr.rel (0) target = $region25
    $region24: #{tpu_custom_call.1} parent=1 // pred_region
      _
    $region25: #{tpu_custom_call.1} parent=1 // pred_fallthru
      _
    // Predicated region
    $region26: #{tpu_custom_call.1} parent=1 // pred_check
      _
    $region27: #{tpu_custom_call.1} parent=1 // pred_check_branch
      %34 = sbr.rel (0) target = $region29
    $region28: #{tpu_custom_call.1} parent=1 // pred_region
      _
    $region29: #{tpu_custom_call.1} parent=1 // pred_fallthru
      _
    // Predicated region
    $region30: #{tpu_custom_call.1} parent=1 // pred_check
      _
    $region31: #{tpu_custom_call.1} parent=1 // pred_check_branch
      %36 = sbr.rel (0) target = $region33
    $region32: #{tpu_custom_call.1} parent=1 // pred_region
      _
    $region33: #{tpu_custom_call.1} parent=1 // pred_fallthru
      _
    // Predicated region
    $region34: #{tpu_custom_call.1} parent=1 // pred_check
      _
    $region35: #{tpu_custom_call.1} parent=1 // pred_check_branch
      %38 = sbr.rel (0) target = $region37
    $region36: #{tpu_custom_call.1} parent=1 // pred_region
      _
    $region37: #{tpu_custom_call.1} parent=1 // pred_fallthru
      _
    // Predicated region
    $region38: #{tpu_custom_call.1} parent=1 // pred_check
      _
    $region39: #{tpu_custom_call.1} parent=1 // pred_check_branch
      %40 = sbr.rel (0) target = $region41
    $region40: #{tpu_custom_call.1} parent=1 // pred_region
      _
    $region41: #{tpu_custom_call.1} parent=1 // pred_fallthru
      _
    // Predicated region
    $region42: #{tpu_custom_call.1} parent=1 // pred_check
      _
    $region43: #{tpu_custom_call.1} parent=1 // pred_check_branch
      %42 = sbr.rel (0) target = $region45
    $region44: #{tpu_custom_call.1} parent=1 // pred_region
      _
    $region45: #{tpu_custom_call.1} parent=1 // pred_fallthru
      _
    // Predicated region
    $region46: #{tpu_custom_call.1} parent=1 // pred_check
      _
    $region47: #{tpu_custom_call.1} parent=1 // pred_check_branch
      %44 = sbr.rel (0) target = $region49
    $region48: #{tpu_custom_call.1} parent=1 // pred_region
      _
    $region49: #{tpu_custom_call.1} parent=1 // pred_fallthru
      _
    // Predicated region
    $region50: #{tpu_custom_call.1} parent=1 // pred_check
      _
    $region51: #{tpu_custom_call.1} parent=1 // pred_check_branch
      %46 = sbr.rel (0) target = $region53
    $region52: #{tpu_custom_call.1} parent=1 // pred_region
      _
    $region53: #{tpu_custom_call.1} parent=1 // pred_fallthru
      _
    // Predicated region
    $region54: #{tpu_custom_call.1} parent=1 // pred_check
      _
    $region55: #{tpu_custom_call.1} parent=1 // pred_check_branch
      %48 = sbr.rel (0) target = $region57
    $region56: #{tpu_custom_call.1} parent=1 // pred_region
      _
    $region57: #{tpu_custom_call.1} parent=1 // pred_fallthru
      _
    // Predicated region
    $region58: #{tpu_custom_call.1} parent=1 // pred_check
      _
    $region59: #{tpu_custom_call.1} parent=1 // pred_check_branch
      %50 = sbr.rel (0) target = $region61
    $region60: #{tpu_custom_call.1} parent=1 // pred_region
      _
    $region61: #{tpu_custom_call.1} parent=1 // pred_fallthru
      _
    %v51 = vld [vmem:[%s0] sm:$0xff]
    %v52 = vld [vmem:[%s0 + $0x8] sm:$0xff]
    %v53 = vld [vmem:[%s3] sm:$0x1]
    %v54 = vld [vmem:[%s4] sm:$0x1]
    %vm55 = vcmask 261120
    %v56 = vsel %vm55, %v51, 0.0
    %57 = vadd.xlane.f32.xlu0 %v56
    %v58 = vpop.xlane.xlu0 %57
    %v59 = vsel %vm55, %v52, 0.0
    %60 = vadd.xlane.f32.xlu0 %v59
    %v61 = vpop.xlane.xlu0 %60
    %v62 = vrcp.pop 32.0
    %v63 = vmul.f32 %v58, %v62
    %v64 = vmul.f32 %v61, %v62
    %v65 = vsub.f32 %v51, %v63
    %v66 = vsub.f32 %v52, %v64
    %v67 = vmul.f32 %v65, %v65
    %v68 = vmul.f32 %v66, %v66
    %v69 = vsel %vm55, %v67, 0.0
    %70 = vadd.xlane.f32.xlu0 %v69
    %v71 = vpop.xlane.xlu0 %70
    %v72 = vsel %vm55, %v68, 0.0
    %73 = vadd.xlane.f32.xlu0 %v72
    %v74 = vpop.xlane.xlu0 %73
    %v75 = vmul.f32 %v71, %v62
    %v76 = vmul.f32 %v74, %v62
    %v77 = vadd.f32 %v75, 1e-05
    %v78 = vadd.f32 %v76, 1e-05
    %v79 = vrsqrt.pop %v77
    %v80 = vrsqrt.pop %v78
    %v81 = vmul.f32 %v65, %v79
    %v82 = vmul.f32 %v66, %v80
    %v84 = vlaneseq
    %v85 = vshrl.u32 %v84, 7
    %v86 = vsub.s32 0, %v85
    %v87 = vrot.slane %v53, %v86
    %v89 = vmul.f32 %v81, %v87
    %v90 = vmul.f32 %v82, %v87
    %v92 = vlaneseq
    %v93 = vshrl.u32 %v92, 7
    %v94 = vsub.s32 0, %v93
    %v95 = vrot.slane %v54, %v94
    %v97 = vadd.f32 %v89, %v95
    %v98 = vadd.f32 %v90, %v95
    %v99 = vld [vmem:[%s5] sm:$0xff]
    %v100 = vld [vmem:[%s5 + $0x8] sm:$0xff]
    %v101 = vld [vmem:[%s5 + $0x10] sm:$0xff]
    %v102 = vld [vmem:[%s5 + $0x18] sm:$0xff]
    %v103 = vld [vmem:[%s6] sm:$0x1]
    %v105 = vlaneseq
    %v106 = vshrl.u32 %v105, 7
    %v107 = vsub.s32 0, %v106
    %v108 = vrot.slane %v103, %v107
    %v111 = vsel %vm55, %v97, 0
    %v114 = vsel %vm55, %v98, 0
    %116 = vmatprep.subr.mxu0 0.0
    %117 = vmatpush1.msra.mxu0 0.0
    %118 = vmatprep.subr.mxu0 0.0
    %119 = vmatpush1.msra.mxu0 0.0
    %120 = vmatprep.subr.mxu0 0.0
    %121 = vmatpush1.msra.mxu0 0.0
    %122 = vmatprep.subr.mxu0 0.0
    %123 = vmatpush1.msra.mxu0 0.0
    %124 = vmatprep.subr.mxu0 0.0
    %125 = vmatpush1.msra.mxu0 0.0
    %126 = vmatprep.subr.mxu0 0.0
    %127 = vmatpush1.msra.mxu0 0.0
    %128 = vmatprep.subr.mxu0 0.0
    %129 = vmatpush1.msra.mxu0 0.0
    %130 = vmatprep.subr.mxu0 0.0
    %131 = vmatpush1.msra.mxu0 0.0
    %132 = vmatprep.subr.mxu0 0.0
    %133 = vmatpush1.msra.mxu0 0.0
    %134 = vmatprep.subr.mxu0 0.0
    %135 = vmatpush1.msra.mxu0 0.0
    %136 = vmatprep.subr.mxu0 0.0
    %137 = vmatpush1.msra.mxu0 0.0
    %138 = vmatprep.subr.mxu0 0.0
    %139 = vmatpush1.msra.mxu0 0.0
    %140 = vmatprep.subr.mxu0 0.0
    %141 = vmatpush1.msra.mxu0 %v102
    %142 = vmatprep.subr.mxu0 0.0
    %143 = vmatpush1.msra.mxu0 %v101
    %144 = vmatprep.subr.mxu0 0.0
    %145 = vmatpush1.msra.mxu0 %v100
    %146 = vmatprep.subr.mxu0 0.0
    %147 = vmatpush1.msra.mxu0 %v99
    %148 = vmatprep.subr.mxu0 0.0
    %149 = vmatpush2.msra.mxu0 0.0
    %150 = vmatprep.subr.mxu0 0.0
    %151 = vmatpush2.msra.mxu0 0.0
    %152 = vmatprep.subr.mxu0 0.0
    %153 = vmatpush2.msra.mxu0 0.0
    %154 = vmatprep.subr.mxu0 0.0
    %155 = vmatpush2.msra.mxu0 0.0
    %156 = vmatprep.subr.mxu0 0.0
    %157 = vmatpush2.msra.mxu0 0.0
    %158 = vmatprep.subr.mxu0 0.0
    %159 = vmatpush2.msra.mxu0 0.0
    %160 = vmatprep.subr.mxu0 0.0
    %161 = vmatpush2.msra.mxu0 0.0
    %162 = vmatprep.subr.mxu0 0.0
    %163 = vmatpush2.msra.mxu0 0.0
    %164 = vmatprep.subr.mxu0 0.0
    %165 = vmatpush2.msra.mxu0 0.0
    %166 = vmatprep.subr.mxu0 0.0
    %167 = vmatpush2.msra.mxu0 0.0
    %168 = vmatprep.subr.mxu0 0.0
    %169 = vmatpush2.msra.mxu0 0.0
    %170 = vmatprep.subr.mxu0 0.0
    %171 = vmatpush2.msra.mxu0 0.0
    %172 = vmatprep.subr.mxu0 0.0
    %173 = vmatpush2.msra.mxu0 0.0
    %174 = vmatprep.subr.mxu0 0.0
    %175 = vmatpush2.msra.mxu0 0.0
    %176 = vmatprep.subr.mxu0 0.0
    %177 = vmatpush2.msra.mxu0 0.0
    %178 = vmatprep.subr.mxu0 0.0
    %179 = vmatpush2.msra.mxu0 0.0
    %180 = vmatprep.mubr.f32.mxu0 0.0
    %181 = vmatmul.mubr.f32.gmra.mxu0 %v111
    %v182 = vpop.f32.mrf.mxu0
    %v183 = vadd.f32 %v108, %v182
    %v184 = vpop.f32.mrf.mxu0
    %185 = vmatprep.mubr.f32.mxu0 0.0
    %186 = vmatmul.mubr.f32.gmra.mxu0 %v114
    %v187 = vpop.f32.mrf.mxu0
    %v188 = vadd.f32 %v108, %v187
    %v189 = vpop.f32.mrf.mxu0
    %190 = vdwg.mxu0
    %v191 = vmul.f32 %v183, 0.35355338
    %v192 = vmul.f32 %v188, 0.35355338
    %v193 = vld [vmem:[%s2] sm:$0xf]
    %v194 = vld [vmem:[%s1] sm:$0xff]
    %v195 = vld [vmem:[%s1 + $0x8] sm:$0xff]
    %v196 = vlaneseq
    %v197 = vshrl.u32 %v196, 7
    %v198 = vsub.s32 0, %v197
    %v199 = vrot.slane %v193, %v198
    %v200 = vmul.f32 %v191, %v199
    %v201 = vmul.f32 %v192, %v199
    %204 = vrot.lane.b32.xlu0 %v183, 96
    %v205 = vpop.permute.xlu0 %204
    %206 = vrot.lane.b32.xlu0 %v188, 96
    %v207 = vpop.permute.xlu0 %206
    %v209 = vsel %vm55, %v200, 0
    %v212 = vsel %vm55, %v201, 0
    %v214 = vsel %vm55, %v205, 0
    %v216 = vsel %vm55, %v207, 0
    %218 = vmatprep.subr.mxu0 0.0
    %219 = vmatpush1.xpose.msra.mxu0 0.0
    %220 = vmatprep.subr.mxu0 0.0
    %221 = vmatpush1.xpose.msra.mxu0 0.0
    %222 = vmatprep.subr.mxu0 0.0
    %223 = vmatpush1.xpose.msra.mxu0 0.0
    %224 = vmatprep.subr.mxu0 0.0
    %225 = vmatpush1.xpose.msra.mxu0 0.0
    %226 = vmatprep.subr.mxu0 0.0
    %227 = vmatpush1.xpose.msra.mxu0 0.0
    %228 = vmatprep.subr.mxu0 0.0
    %229 = vmatpush1.xpose.msra.mxu0 0.0
    %230 = vmatprep.subr.mxu0 0.0
    %231 = vmatpush1.xpose.msra.mxu0 0.0
    %232 = vmatprep.subr.mxu0 0.0
    %233 = vmatpush1.xpose.msra.mxu0 0.0
    %234 = vmatprep.subr.mxu0 0.0
    %235 = vmatpush1.xpose.msra.mxu0 0.0
    %236 = vmatprep.subr.mxu0 0.0
    %237 = vmatpush1.xpose.msra.mxu0 0.0
    %238 = vmatprep.subr.mxu0 0.0
    %239 = vmatpush1.xpose.msra.mxu0 0.0
    %240 = vmatprep.subr.mxu0 0.0
    %241 = vmatpush1.xpose.msra.mxu0 0.0
    %242 = vmatprep.subr.mxu0 0.0
    %243 = vmatpush1.xpose.msra.mxu0 0.0
    %244 = vmatprep.subr.mxu0 0.0
    %245 = vmatpush1.xpose.msra.mxu0 0.0
    %246 = vmatprep.subr.mxu0 0.0
    %247 = vmatpush1.xpose.msra.mxu0 %v216
    %248 = vmatprep.subr.mxu0 0.0
    %249 = vmatpush1.xpose.msra.mxu0 %v214
    %250 = vmatprep.subr.mxu0 0.0
    %251 = vmatpush2.xpose.msra.mxu0 0.0
    %252 = vmatprep.subr.mxu0 0.0
    %253 = vmatpush2.xpose.msra.mxu0 0.0
    %254 = vmatprep.subr.mxu0 0.0
    %255 = vmatpush2.xpose.msra.mxu0 0.0
    %256 = vmatprep.subr.mxu0 0.0
    %257 = vmatpush2.xpose.msra.mxu0 0.0
    %258 = vmatprep.subr.mxu0 0.0
    %259 = vmatpush2.xpose.msra.mxu0 0.0
    %260 = vmatprep.subr.mxu0 0.0
    %261 = vmatpush2.xpose.msra.mxu0 0.0
    %262 = vmatprep.subr.mxu0 0.0
    %263 = vmatpush2.xpose.msra.mxu0 0.0
    %264 = vmatprep.subr.mxu0 0.0
    %265 = vmatpush2.xpose.msra.mxu0 0.0
    %266 = vmatprep.subr.mxu0 0.0
    %267 = vmatpush2.xpose.msra.mxu0 0.0
    %268 = vmatprep.subr.mxu0 0.0
    %269 = vmatpush2.xpose.msra.mxu0 0.0
    %270 = vmatprep.subr.mxu0 0.0
    %271 = vmatpush2.xpose.msra.mxu0 0.0
    %272 = vmatprep.subr.mxu0 0.0
    %273 = vmatpush2.xpose.msra.mxu0 0.0
    %274 = vmatprep.subr.mxu0 0.0
    %275 = vmatpush2.xpose.msra.mxu0 0.0
    %276 = vmatprep.subr.mxu0 0.0
    %277 = vmatpush2.xpose.msra.mxu0 0.0
    %278 = vmatprep.subr.mxu0 0.0
    %279 = vmatpush2.xpose.msra.mxu0 0.0
    %280 = vmatprep.subr.mxu0 0.0
    %281 = vmatpush2.xpose.msra.mxu0 0.0
    %282 = vmatprep.mubr.f32.mxu0 0.0
    %283 = vmatmul.mubr.f32.gmra.mxu0 %v209
    %v284 = vpop.f32.mrf.mxu0
    %v285 = vadd.f32 %v194, %v284
    %v286 = vpop.f32.mrf.mxu0
    %287 = vmatprep.mubr.f32.mxu0 0.0
    %288 = vmatmul.mubr.f32.gmra.mxu0 %v212
    %v289 = vpop.f32.mrf.mxu0
    %v290 = vadd.f32 %v195, %v289
    %v291 = vpop.f32.mrf.mxu0
    %292 = vdwg.mxu0
    %vm293 = vcmask 130048
    %v294 = vsel %vm293, %v285, -inf
    %295 = vmax.xlane.f32.xlu0 %v294
    %v296 = vpop.xlane.xlu0 %295
    %v297 = vsel %vm293, %v290, -inf
    %298 = vmax.xlane.f32.xlu0 %v297
    %v299 = vpop.xlane.xlu0 %298
    %v300 = vsub.f32 %v285, %v296
    %v301 = vsub.f32 %v290, %v299
    %v302 = vmul.f32 %v300, 1.442695
    %v303 = vpow.pop %v302
    %v304 = vmul.f32 %v301, 1.442695
    %v305 = vpow.pop %v304
    %v306 = vsel %vm293, %v303, 0.0
    %307 = vadd.xlane.f32.xlu0 %v306
    %v308 = vpop.xlane.xlu0 %307
    %v309 = vsel %vm293, %v305, 0.0
    %310 = vadd.xlane.f32.xlu0 %v309
    %v311 = vpop.xlane.xlu0 %310
    %v312 = vrcp.pop %v308
    %v313 = vrcp.pop %v311
    %v314 = vmul.f32 %v303, %v312
    %v315 = vmul.f32 %v305, %v313
    %317 = vrot.lane.b32.xlu0 %v199, 64
    %v318 = vpop.permute.xlu0 %317
    %v320 = vmul.f32 %v183, %v318
    %v321 = vmul.f32 %v188, %v318
    %v322 = vlaneseq
    %v323 = vshrl.u32 %v322, 7
    %v324 = vsub.s32 1, %v323
    %v325 = vrot.slane %v193, %v324
    %v326 = vmul.f32 %v191, %v325
    %v327 = vmul.f32 %v192, %v325
    %v329 = vsel %vm55, %v326, 0
    %v332 = vsel %vm55, %v327, 0
    %334 = vmatprep.subr.mxu0 0.0
    %335 = vmatpush1.xpose.msra.mxu0 0.0
    %336 = vmatprep.subr.mxu0 0.0
    %337 = vmatpush1.xpose.msra.mxu0 0.0
    %338 = vmatprep.subr.mxu0 0.0
    %339 = vmatpush1.xpose.msra.mxu0 0.0
    %340 = vmatprep.subr.mxu0 0.0
    %341 = vmatpush1.xpose.msra.mxu0 0.0
    %342 = vmatprep.subr.mxu0 0.0
    %343 = vmatpush1.xpose.msra.mxu0 0.0
    %344 = vmatprep.subr.mxu0 0.0
    %345 = vmatpush1.xpose.msra.mxu0 0.0
    %346 = vmatprep.subr.mxu0 0.0
    %347 = vmatpush1.xpose.msra.mxu0 0.0
    %348 = vmatprep.subr.mxu0 0.0
    %349 = vmatpush1.xpose.msra.mxu0 0.0
    %350 = vmatprep.subr.mxu0 0.0
    %351 = vmatpush1.xpose.msra.mxu0 0.0
    %352 = vmatprep.subr.mxu0 0.0
    %353 = vmatpush1.xpose.msra.mxu0 0.0
    %354 = vmatprep.subr.mxu0 0.0
    %355 = vmatpush1.xpose.msra.mxu0 0.0
    %356 = vmatprep.subr.mxu0 0.0
    %357 = vmatpush1.xpose.msra.mxu0 0.0
    %358 = vmatprep.subr.mxu0 0.0
    %359 = vmatpush1.xpose.msra.mxu0 0.0
    %360 = vmatprep.subr.mxu0 0.0
    %361 = vmatpush1.xpose.msra.mxu0 0.0
    %362 = vmatprep.subr.mxu0 0.0
    %363 = vmatpush1.xpose.msra.mxu0 %v216
    %364 = vmatprep.subr.mxu0 0.0
    %365 = vmatpush1.xpose.msra.mxu0 %v214
    %366 = vmatprep.subr.mxu0 0.0
    %367 = vmatpush2.xpose.msra.mxu0 0.0
    %368 = vmatprep.subr.mxu0 0.0
    %369 = vmatpush2.xpose.msra.mxu0 0.0
    %370 = vmatprep.subr.mxu0 0.0
    %371 = vmatpush2.xpose.msra.mxu0 0.0
    %372 = vmatprep.subr.mxu0 0.0
    %373 = vmatpush2.xpose.msra.mxu0 0.0
    %374 = vmatprep.subr.mxu0 0.0
    %375 = vmatpush2.xpose.msra.mxu0 0.0
    %376 = vmatprep.subr.mxu0 0.0
    %377 = vmatpush2.xpose.msra.mxu0 0.0
    %378 = vmatprep.subr.mxu0 0.0
    %379 = vmatpush2.xpose.msra.mxu0 0.0
    %380 = vmatprep.subr.mxu0 0.0
    %381 = vmatpush2.xpose.msra.mxu0 0.0
    %382 = vmatprep.subr.mxu0 0.0
    %383 = vmatpush2.xpose.msra.mxu0 0.0
    %384 = vmatprep.subr.mxu0 0.0
    %385 = vmatpush2.xpose.msra.mxu0 0.0
    %386 = vmatprep.subr.mxu0 0.0
    %387 = vmatpush2.xpose.msra.mxu0 0.0
    %388 = vmatprep.subr.mxu0 0.0
    %389 = vmatpush2.xpose.msra.mxu0 0.0
    %390 = vmatprep.subr.mxu0 0.0
    %391 = vmatpush2.xpose.msra.mxu0 0.0
    %392 = vmatprep.subr.mxu0 0.0
    %393 = vmatpush2.xpose.msra.mxu0 0.0
    %394 = vmatprep.subr.mxu0 0.0
    %395 = vmatpush2.xpose.msra.mxu0 0.0
    %396 = vmatprep.subr.mxu0 0.0
    %397 = vmatpush2.xpose.msra.mxu0 0.0
    %398 = vmatprep.mubr.f32.mxu0 0.0
    %399 = vmatmul.mubr.f32.gmra.mxu0 %v329
    %v400 = vpop.f32.mrf.mxu0
    %v401 = vadd.f32 %v194, %v400
    %v402 = vpop.f32.mrf.mxu0
    %403 = vmatprep.mubr.f32.mxu0 0.0
    %404 = vmatmul.mubr.f32.gmra.mxu0 %v332
    %v405 = vpop.f32.mrf.mxu0
    %v406 = vadd.f32 %v195, %v405
    %v407 = vpop.f32.mrf.mxu0
    %408 = vdwg.mxu0
    %v409 = vsel %vm293, %v401, -inf
    %410 = vmax.xlane.f32.xlu0 %v409
    %v411 = vpop.xlane.xlu0 %410
    %v412 = vsel %vm293, %v406, -inf
    %413 = vmax.xlane.f32.xlu0 %v412
    %v414 = vpop.xlane.xlu0 %413
    %v415 = vsub.f32 %v401, %v411
    %v416 = vsub.f32 %v406, %v414
    %v417 = vmul.f32 %v415, 1.442695
    %v418 = vpow.pop %v417
    %v419 = vmul.f32 %v416, 1.442695
    %v420 = vpow.pop %v419
    %v421 = vsel %vm293, %v418, 0.0
    %422 = vadd.xlane.f32.xlu0 %v421
    %v423 = vpop.xlane.xlu0 %422
    %v424 = vsel %vm293, %v420, 0.0
    %425 = vadd.xlane.f32.xlu0 %v424
    %v426 = vpop.xlane.xlu0 %425
    %v427 = vrcp.pop %v423
    %v428 = vrcp.pop %v426
    %v429 = vmul.f32 %v418, %v427
    %v430 = vmul.f32 %v420, %v428
    %432 = vrot.lane.b32.xlu0 %v325, 64
    %v433 = vpop.permute.xlu0 %432
    %v435 = vmul.f32 %v183, %v433
    %v436 = vmul.f32 %v188, %v433
    %439 = vrot.lane.b32.xlu0 %v435, 64
    %v440 = vpop.permute.xlu0 %439
    %441 = vrot.lane.b32.xlu0 %v436, 64
    %v442 = vpop.permute.xlu0 %441
    %v446 = vsel %vm293, %v429, 0
    %v449 = vsel %vm293, %v430, 0
    %451 = vmatprep.subr.mxu0 0.0
    %452 = vmatpush1.msra.mxu0 0.0
    %453 = vmatprep.subr.mxu0 0.0
    %454 = vmatpush1.msra.mxu0 0.0
    %455 = vmatprep.subr.mxu0 0.0
    %456 = vmatpush1.msra.mxu0 0.0
    %457 = vmatprep.subr.mxu0 0.0
    %458 = vmatpush1.msra.mxu0 0.0
    %459 = vmatprep.subr.mxu0 0.0
    %460 = vmatpush1.msra.mxu0 0.0
    %461 = vmatprep.subr.mxu0 0.0
    %462 = vmatpush1.msra.mxu0 0.0
    %463 = vmatprep.subr.mxu0 0.0
    %464 = vmatpush1.msra.mxu0 0.0
    %465 = vmatprep.subr.mxu0 0.0
    %466 = vmatpush1.msra.mxu0 0.0
    %467 = vmatprep.subr.mxu0 0.0
    %468 = vmatpush1.msra.mxu0 0.0
    %469 = vmatprep.subr.mxu0 0.0
    %470 = vmatpush1.msra.mxu0 0.0
    %471 = vmatprep.subr.mxu0 0.0
    %472 = vmatpush1.msra.mxu0 0.0
    %473 = vmatprep.subr.mxu0 0.0
    %474 = vmatpush1.msra.mxu0 0.0
    %475 = vmatprep.subr.mxu0 0.0
    %476 = vmatpush1.msra.mxu0 0.0
    %477 = vmatprep.subr.mxu0 0.0
    %478 = vmatpush1.msra.mxu0 0.0
    %479 = vmatprep.subr.mxu0 0.0
    %480 = vmatpush1.msra.mxu0 %v442
    %481 = vmatprep.subr.mxu0 0.0
    %482 = vmatpush1.msra.mxu0 %v440
    %483 = vmatprep.subr.mxu0 0.0
    %484 = vmatpush2.msra.mxu0 0.0
    %485 = vmatprep.subr.mxu0 0.0
    %486 = vmatpush2.msra.mxu0 0.0
    %487 = vmatprep.subr.mxu0 0.0
    %488 = vmatpush2.msra.mxu0 0.0
    %489 = vmatprep.subr.mxu0 0.0
    %490 = vmatpush2.msra.mxu0 0.0
    %491 = vmatprep.subr.mxu0 0.0
    %492 = vmatpush2.msra.mxu0 0.0
    %493 = vmatprep.subr.mxu0 0.0
    %494 = vmatpush2.msra.mxu0 0.0
    %495 = vmatprep.subr.mxu0 0.0
    %496 = vmatpush2.msra.mxu0 0.0
    %497 = vmatprep.subr.mxu0 0.0
    %498 = vmatpush2.msra.mxu0 0.0
    %499 = vmatprep.subr.mxu0 0.0
    %500 = vmatpush2.msra.mxu0 0.0
    %501 = vmatprep.subr.mxu0 0.0
    %502 = vmatpush2.msra.mxu0 0.0
    %503 = vmatprep.subr.mxu0 0.0
    %504 = vmatpush2.msra.mxu0 0.0
    %505 = vmatprep.subr.mxu0 0.0
    %506 = vmatpush2.msra.mxu0 0.0
    %507 = vmatprep.subr.mxu0 0.0
    %508 = vmatpush2.msra.mxu0 0.0
    %509 = vmatprep.subr.mxu0 0.0
    %510 = vmatpush2.msra.mxu0 0.0
    %511 = vmatprep.subr.mxu0 0.0
    %512 = vmatpush2.msra.mxu0 0.0
    %513 = vmatprep.subr.mxu0 0.0
    %514 = vmatpush2.msra.mxu0 0.0
    %515 = vmatprep.mubr.f32.mxu0 0.0
    %516 = vmatmul.mubr.f32.gmra.mxu0 %v446
    %v517 = vpop.f32.mrf.mxu0
    %v518 = vadd.f32 0.0, %v517
    %v519 = vpop.f32.mrf.mxu0
    %520 = vmatprep.mubr.f32.mxu0 0.0
    %521 = vmatmul.mubr.f32.gmra.mxu0 %v449
    %v522 = vpop.f32.mrf.mxu0
    %v523 = vadd.f32 0.0, %v522
    %v524 = vpop.f32.mrf.mxu0
    %525 = vdwg.mxu0
    %v526 = vlaneseq
    %v527 = vshrl.u32 %v526, 7
    %v528 = vsub.s32 2, %v527
    %v529 = vrot.slane %v193, %v528
    %v530 = vmul.f32 %v191, %v529
    %v531 = vmul.f32 %v192, %v529
    %v533 = vsel %vm55, %v530, 0
    %v536 = vsel %vm55, %v531, 0
    %538 = vmatprep.subr.mxu0 0.0
    %539 = vmatpush1.xpose.msra.mxu0 0.0
    %540 = vmatprep.subr.mxu0 0.0
    %541 = vmatpush1.xpose.msra.mxu0 0.0
    %542 = vmatprep.subr.mxu0 0.0
    %543 = vmatpush1.xpose.msra.mxu0 0.0
    %544 = vmatprep.subr.mxu0 0.0
    %545 = vmatpush1.xpose.msra.mxu0 0.0
    %546 = vmatprep.subr.mxu0 0.0
    %547 = vmatpush1.xpose.msra.mxu0 0.0
    %548 = vmatprep.subr.mxu0 0.0
    %549 = vmatpush1.xpose.msra.mxu0 0.0
    %550 = vmatprep.subr.mxu0 0.0
    %551 = vmatpush1.xpose.msra.mxu0 0.0
    %552 = vmatprep.subr.mxu0 0.0
    %553 = vmatpush1.xpose.msra.mxu0 0.0
    %554 = vmatprep.subr.mxu0 0.0
    %555 = vmatpush1.xpose.msra.mxu0 0.0
    %556 = vmatprep.subr.mxu0 0.0
    %557 = vmatpush1.xpose.msra.mxu0 0.0
    %558 = vmatprep.subr.mxu0 0.0
    %559 = vmatpush1.xpose.msra.mxu0 0.0
    %560 = vmatprep.subr.mxu0 0.0
    %561 = vmatpush1.xpose.msra.mxu0 0.0
    %562 = vmatprep.subr.mxu0 0.0
    %563 = vmatpush1.xpose.msra.mxu0 0.0
    %564 = vmatprep.subr.mxu0 0.0
    %565 = vmatpush1.xpose.msra.mxu0 0.0
    %566 = vmatprep.subr.mxu0 0.0
    %567 = vmatpush1.xpose.msra.mxu0 %v216
    %568 = vmatprep.subr.mxu0 0.0
    %569 = vmatpush1.xpose.msra.mxu0 %v214
    %570 = vmatprep.subr.mxu0 0.0
    %571 = vmatpush2.xpose.msra.mxu0 0.0
    %572 = vmatprep.subr.mxu0 0.0
    %573 = vmatpush2.xpose.msra.mxu0 0.0
    %574 = vmatprep.subr.mxu0 0.0
    %575 = vmatpush2.xpose.msra.mxu0 0.0
    %576 = vmatprep.subr.mxu0 0.0
    %577 = vmatpush2.xpose.msra.mxu0 0.0
    %578 = vmatprep.subr.mxu0 0.0
    %579 = vmatpush2.xpose.msra.mxu0 0.0
    %580 = vmatprep.subr.mxu0 0.0
    %581 = vmatpush2.xpose.msra.mxu0 0.0
    %582 = vmatprep.subr.mxu0 0.0
    %583 = vmatpush2.xpose.msra.mxu0 0.0
    %584 = vmatprep.subr.mxu0 0.0
    %585 = vmatpush2.xpose.msra.mxu0 0.0
    %586 = vmatprep.subr.mxu0 0.0
    %587 = vmatpush2.xpose.msra.mxu0 0.0
    %588 = vmatprep.subr.mxu0 0.0
    %589 = vmatpush2.xpose.msra.mxu0 0.0
    %590 = vmatprep.subr.mxu0 0.0
    %591 = vmatpush2.xpose.msra.mxu0 0.0
    %592 = vmatprep.subr.mxu0 0.0
    %593 = vmatpush2.xpose.msra.mxu0 0.0
    %594 = vmatprep.subr.mxu0 0.0
    %595 = vmatpush2.xpose.msra.mxu0 0.0
    %596 = vmatprep.subr.mxu0 0.0
    %597 = vmatpush2.xpose.msra.mxu0 0.0
    %598 = vmatprep.subr.mxu0 0.0
    %599 = vmatpush2.xpose.msra.mxu0 0.0
    %600 = vmatprep.subr.mxu0 0.0
    %601 = vmatpush2.xpose.msra.mxu0 0.0
    %602 = vmatprep.mubr.f32.mxu0 0.0
    %603 = vmatmul.mubr.f32.gmra.mxu0 %v533
    %v604 = vpop.f32.mrf.mxu0
    %v605 = vadd.f32 %v194, %v604
    %v606 = vpop.f32.mrf.mxu0
    %607 = vmatprep.mubr.f32.mxu0 0.0
    %608 = vmatmul.mubr.f32.gmra.mxu0 %v536
    %v609 = vpop.f32.mrf.mxu0
    %v610 = vadd.f32 %v195, %v609
    %v611 = vpop.f32.mrf.mxu0
    %612 = vdwg.mxu0
    %v613 = vsel %vm293, %v605, -inf
    %614 = vmax.xlane.f32.xlu0 %v613
    %v615 = vpop.xlane.xlu0 %614
    %v616 = vsel %vm293, %v610, -inf
    %617 = vmax.xlane.f32.xlu0 %v616
    %v618 = vpop.xlane.xlu0 %617
    %v619 = vsub.f32 %v605, %v615
    %v620 = vsub.f32 %v610, %v618
    %v621 = vmul.f32 %v619, 1.442695
    %v622 = vpow.pop %v621
    %v623 = vmul.f32 %v620, 1.442695
    %v624 = vpow.pop %v623
    %v625 = vsel %vm293, %v622, 0.0
    %626 = vadd.xlane.f32.xlu0 %v625
    %v627 = vpop.xlane.xlu0 %626
    %v628 = vsel %vm293, %v624, 0.0
    %629 = vadd.xlane.f32.xlu0 %v628
    %v630 = vpop.xlane.xlu0 %629
    %v631 = vrcp.pop %v627
    %v632 = vrcp.pop %v630
    %v633 = vmul.f32 %v622, %v631
    %v634 = vmul.f32 %v624, %v632
    %636 = vrot.lane.b32.xlu0 %v529, 64
    %v637 = vpop.permute.xlu0 %636
    %v639 = vmul.f32 %v183, %v637
    %v640 = vmul.f32 %v188, %v637
    %v641 = vlaneseq
    %v642 = vshrl.u32 %v641, 7
    %v643 = vsub.s32 3, %v642
    %v644 = vrot.slane %v193, %v643
    %v645 = vmul.f32 %v191, %v644
    %v646 = vmul.f32 %v192, %v644
    %v648 = vsel %vm55, %v645, 0
    %v651 = vsel %vm55, %v646, 0
    %653 = vmatprep.subr.mxu0 0.0
    %654 = vmatpush1.xpose.msra.mxu0 0.0
    %655 = vmatprep.subr.mxu0 0.0
    %656 = vmatpush1.xpose.msra.mxu0 0.0
    %657 = vmatprep.subr.mxu0 0.0
    %658 = vmatpush1.xpose.msra.mxu0 0.0
    %659 = vmatprep.subr.mxu0 0.0
    %660 = vmatpush1.xpose.msra.mxu0 0.0
    %661 = vmatprep.subr.mxu0 0.0
    %662 = vmatpush1.xpose.msra.mxu0 0.0
    %663 = vmatprep.subr.mxu0 0.0
    %664 = vmatpush1.xpose.msra.mxu0 0.0
    %665 = vmatprep.subr.mxu0 0.0
    %666 = vmatpush1.xpose.msra.mxu0 0.0
    %667 = vmatprep.subr.mxu0 0.0
    %668 = vmatpush1.xpose.msra.mxu0 0.0
    %669 = vmatprep.subr.mxu0 0.0
    %670 = vmatpush1.xpose.msra.mxu0 0.0
    %671 = vmatprep.subr.mxu0 0.0
    %672 = vmatpush1.xpose.msra.mxu0 0.0
    %673 = vmatprep.subr.mxu0 0.0
    %674 = vmatpush1.xpose.msra.mxu0 0.0
    %675 = vmatprep.subr.mxu0 0.0
    %676 = vmatpush1.xpose.msra.mxu0 0.0
    %677 = vmatprep.subr.mxu0 0.0
    %678 = vmatpush1.xpose.msra.mxu0 0.0
    %679 = vmatprep.subr.mxu0 0.0
    %680 = vmatpush1.xpose.msra.mxu0 0.0
    %681 = vmatprep.subr.mxu0 0.0
    %682 = vmatpush1.xpose.msra.mxu0 %v216
    %683 = vmatprep.subr.mxu0 0.0
    %684 = vmatpush1.xpose.msra.mxu0 %v214
    %685 = vmatprep.subr.mxu0 0.0
    %686 = vmatpush2.xpose.msra.mxu0 0.0
    %687 = vmatprep.subr.mxu0 0.0
    %688 = vmatpush2.xpose.msra.mxu0 0.0
    %689 = vmatprep.subr.mxu0 0.0
    %690 = vmatpush2.xpose.msra.mxu0 0.0
    %691 = vmatprep.subr.mxu0 0.0
    %692 = vmatpush2.xpose.msra.mxu0 0.0
    %693 = vmatprep.subr.mxu0 0.0
    %694 = vmatpush2.xpose.msra.mxu0 0.0
    %695 = vmatprep.subr.mxu0 0.0
    %696 = vmatpush2.xpose.msra.mxu0 0.0
    %697 = vmatprep.subr.mxu0 0.0
    %698 = vmatpush2.xpose.msra.mxu0 0.0
    %699 = vmatprep.subr.mxu0 0.0
    %700 = vmatpush2.xpose.msra.mxu0 0.0
    %701 = vmatprep.subr.mxu0 0.0
    %702 = vmatpush2.xpose.msra.mxu0 0.0
    %703 = vmatprep.subr.mxu0 0.0
    %704 = vmatpush2.xpose.msra.mxu0 0.0
    %705 = vmatprep.subr.mxu0 0.0
    %706 = vmatpush2.xpose.msra.mxu0 0.0
    %707 = vmatprep.subr.mxu0 0.0
    %708 = vmatpush2.xpose.msra.mxu0 0.0
    %709 = vmatprep.subr.mxu0 0.0
    %710 = vmatpush2.xpose.msra.mxu0 0.0
    %711 = vmatprep.subr.mxu0 0.0
    %712 = vmatpush2.xpose.msra.mxu0 0.0
    %713 = vmatprep.subr.mxu0 0.0
    %714 = vmatpush2.xpose.msra.mxu0 0.0
    %715 = vmatprep.subr.mxu0 0.0
    %716 = vmatpush2.xpose.msra.mxu0 0.0
    %717 = vmatprep.mubr.f32.mxu0 0.0
    %718 = vmatmul.mubr.f32.gmra.mxu0 %v648
    %v719 = vpop.f32.mrf.mxu0
    %v720 = vadd.f32 %v194, %v719
    %v721 = vpop.f32.mrf.mxu0
    %722 = vmatprep.mubr.f32.mxu0 0.0
    %723 = vmatmul.mubr.f32.gmra.mxu0 %v651
    %v724 = vpop.f32.mrf.mxu0
    %v725 = vadd.f32 %v195, %v724
    %v726 = vpop.f32.mrf.mxu0
    %727 = vdwg.mxu0
    %v728 = vsel %vm293, %v720, -inf
    %729 = vmax.xlane.f32.xlu0 %v728
    %v730 = vpop.xlane.xlu0 %729
    %v731 = vsel %vm293, %v725, -inf
    %732 = vmax.xlane.f32.xlu0 %v731
    %v733 = vpop.xlane.xlu0 %732
    %v734 = vsub.f32 %v720, %v730
    %v735 = vsub.f32 %v725, %v733
    %v736 = vmul.f32 %v734, 1.442695
    %v737 = vpow.pop %v736
    %v738 = vmul.f32 %v735, 1.442695
    %v739 = vpow.pop %v738
    %v740 = vsel %vm293, %v737, 0.0
    %741 = vadd.xlane.f32.xlu0 %v740
    %v742 = vpop.xlane.xlu0 %741
    %v743 = vsel %vm293, %v739, 0.0
    %744 = vadd.xlane.f32.xlu0 %v743
    %v745 = vpop.xlane.xlu0 %744
    %v746 = vrcp.pop %v742
    %v747 = vrcp.pop %v745
    %v748 = vmul.f32 %v737, %v746
    %v749 = vmul.f32 %v739, %v747
    %751 = vrot.lane.b32.xlu0 %v644, 64
    %v752 = vpop.permute.xlu0 %751
    %v754 = vmul.f32 %v183, %v752
    %v755 = vmul.f32 %v188, %v752
    %758 = vrot.lane.b32.xlu0 %v754, 64
    %v759 = vpop.permute.xlu0 %758
    %760 = vrot.lane.b32.xlu0 %v755, 64
    %v761 = vpop.permute.xlu0 %760
    %v765 = vsel %vm293, %v748, 0
    %v768 = vsel %vm293, %v749, 0
    %770 = vmatprep.subr.mxu0 0.0
    %771 = vmatpush1.msra.mxu0 0.0
    %772 = vmatprep.subr.mxu0 0.0
    %773 = vmatpush1.msra.mxu0 0.0
    %774 = vmatprep.subr.mxu0 0.0
    %775 = vmatpush1.msra.mxu0 0.0
    %776 = vmatprep.subr.mxu0 0.0
    %777 = vmatpush1.msra.mxu0 0.0
    %778 = vmatprep.subr.mxu0 0.0
    %779 = vmatpush1.msra.mxu0 0.0
    %780 = vmatprep.subr.mxu0 0.0
    %781 = vmatpush1.msra.mxu0 0.0
    %782 = vmatprep.subr.mxu0 0.0
    %783 = vmatpush1.msra.mxu0 0.0
    %784 = vmatprep.subr.mxu0 0.0
    %785 = vmatpush1.msra.mxu0 0.0
    %786 = vmatprep.subr.mxu0 0.0
    %787 = vmatpush1.msra.mxu0 0.0
    %788 = vmatprep.subr.mxu0 0.0
    %789 = vmatpush1.msra.mxu0 0.0
    %790 = vmatprep.subr.mxu0 0.0
    %791 = vmatpush1.msra.mxu0 0.0
    %792 = vmatprep.subr.mxu0 0.0
    %793 = vmatpush1.msra.mxu0 0.0
    %794 = vmatprep.subr.mxu0 0.0
    %795 = vmatpush1.msra.mxu0 0.0
    %796 = vmatprep.subr.mxu0 0.0
    %797 = vmatpush1.msra.mxu0 0.0
    %798 = vmatprep.subr.mxu0 0.0
    %799 = vmatpush1.msra.mxu0 %v761
    %800 = vmatprep.subr.mxu0 0.0
    %801 = vmatpush1.msra.mxu0 %v759
    %802 = vmatprep.subr.mxu0 0.0
    %803 = vmatpush2.msra.mxu0 0.0
    %804 = vmatprep.subr.mxu0 0.0
    %805 = vmatpush2.msra.mxu0 0.0
    %806 = vmatprep.subr.mxu0 0.0
    %807 = vmatpush2.msra.mxu0 0.0
    %808 = vmatprep.subr.mxu0 0.0
    %809 = vmatpush2.msra.mxu0 0.0
    %810 = vmatprep.subr.mxu0 0.0
    %811 = vmatpush2.msra.mxu0 0.0
    %812 = vmatprep.subr.mxu0 0.0
    %813 = vmatpush2.msra.mxu0 0.0
    %814 = vmatprep.subr.mxu0 0.0
    %815 = vmatpush2.msra.mxu0 0.0
    %816 = vmatprep.subr.mxu0 0.0
    %817 = vmatpush2.msra.mxu0 0.0
    %818 = vmatprep.subr.mxu0 0.0
    %819 = vmatpush2.msra.mxu0 0.0
    %820 = vmatprep.subr.mxu0 0.0
    %821 = vmatpush2.msra.mxu0 0.0
    %822 = vmatprep.subr.mxu0 0.0
    %823 = vmatpush2.msra.mxu0 0.0
    %824 = vmatprep.subr.mxu0 0.0
    %825 = vmatpush2.msra.mxu0 0.0
    %826 = vmatprep.subr.mxu0 0.0
    %827 = vmatpush2.msra.mxu0 0.0
    %828 = vmatprep.subr.mxu0 0.0
    %829 = vmatpush2.msra.mxu0 0.0
    %830 = vmatprep.subr.mxu0 0.0
    %831 = vmatpush2.msra.mxu0 0.0
    %832 = vmatprep.subr.mxu0 0.0
    %833 = vmatpush2.msra.mxu0 0.0
    %834 = vmatprep.mubr.f32.mxu0 0.0
    %835 = vmatmul.mubr.f32.gmra.mxu0 %v765
    %v836 = vpop.f32.mrf.mxu0
    %v837 = vadd.f32 0.0, %v836
    %v838 = vpop.f32.mrf.mxu0
    %839 = vmatprep.mubr.f32.mxu0 0.0
    %840 = vmatmul.mubr.f32.gmra.mxu0 %v768
    %v841 = vpop.f32.mrf.mxu0
    %v842 = vadd.f32 0.0, %v841
    %v843 = vpop.f32.mrf.mxu0
    %844 = vdwg.mxu0
    %847 = vrot.lane.b32.xlu0 %v320, 64
    %v848 = vpop.permute.xlu0 %847
    %849 = vrot.lane.b32.xlu0 %v321, 64
    %v850 = vpop.permute.xlu0 %849
    %v854 = vsel %vm293, %v314, 0
    %v857 = vsel %vm293, %v315, 0
    %859 = vmatprep.subr.mxu0 0.0
    %860 = vmatpush1.msra.mxu0 0.0
    %861 = vmatprep.subr.mxu0 0.0
    %862 = vmatpush1.msra.mxu0 0.0
    %863 = vmatprep.subr.mxu0 0.0
    %864 = vmatpush1.msra.mxu0 0.0
    %865 = vmatprep.subr.mxu0 0.0
    %866 = vmatpush1.msra.mxu0 0.0
    %867 = vmatprep.subr.mxu0 0.0
    %868 = vmatpush1.msra.mxu0 0.0
    %869 = vmatprep.subr.mxu0 0.0
    %870 = vmatpush1.msra.mxu0 0.0
    %871 = vmatprep.subr.mxu0 0.0
    %872 = vmatpush1.msra.mxu0 0.0
    %873 = vmatprep.subr.mxu0 0.0
    %874 = vmatpush1.msra.mxu0 0.0
    %875 = vmatprep.subr.mxu0 0.0
    %876 = vmatpush1.msra.mxu0 0.0
    %877 = vmatprep.subr.mxu0 0.0
    %878 = vmatpush1.msra.mxu0 0.0
    %879 = vmatprep.subr.mxu0 0.0
    %880 = vmatpush1.msra.mxu0 0.0
    %881 = vmatprep.subr.mxu0 0.0
    %882 = vmatpush1.msra.mxu0 0.0
    %883 = vmatprep.subr.mxu0 0.0
    %884 = vmatpush1.msra.mxu0 0.0
    %885 = vmatprep.subr.mxu0 0.0
    %886 = vmatpush1.msra.mxu0 0.0
    %887 = vmatprep.subr.mxu0 0.0
    %888 = vmatpush1.msra.mxu0 %v850
    %889 = vmatprep.subr.mxu0 0.0
    %890 = vmatpush1.msra.mxu0 %v848
    %891 = vmatprep.subr.mxu0 0.0
    %892 = vmatpush2.msra.mxu0 0.0
    %893 = vmatprep.subr.mxu0 0.0
    %894 = vmatpush2.msra.mxu0 0.0
    %895 = vmatprep.subr.mxu0 0.0
    %896 = vmatpush2.msra.mxu0 0.0
    %897 = vmatprep.subr.mxu0 0.0
    %898 = vmatpush2.msra.mxu0 0.0
    %899 = vmatprep.subr.mxu0 0.0
    %900 = vmatpush2.msra.mxu0 0.0
    %901 = vmatprep.subr.mxu0 0.0
    %902 = vmatpush2.msra.mxu0 0.0
    %903 = vmatprep.subr.mxu0 0.0
    %904 = vmatpush2.msra.mxu0 0.0
    %905 = vmatprep.subr.mxu0 0.0
    %906 = vmatpush2.msra.mxu0 0.0
    %907 = vmatprep.subr.mxu0 0.0
    %908 = vmatpush2.msra.mxu0 0.0
    %909 = vmatprep.subr.mxu0 0.0
    %910 = vmatpush2.msra.mxu0 0.0
    %911 = vmatprep.subr.mxu0 0.0
    %912 = vmatpush2.msra.mxu0 0.0
    %913 = vmatprep.subr.mxu0 0.0
    %914 = vmatpush2.msra.mxu0 0.0
    %915 = vmatprep.subr.mxu0 0.0
    %916 = vmatpush2.msra.mxu0 0.0
    %917 = vmatprep.subr.mxu0 0.0
    %918 = vmatpush2.msra.mxu0 0.0
    %919 = vmatprep.subr.mxu0 0.0
    %920 = vmatpush2.msra.mxu0 0.0
    %921 = vmatprep.subr.mxu0 0.0
    %922 = vmatpush2.msra.mxu0 0.0
    %923 = vmatprep.mubr.f32.mxu0 0.0
    %924 = vmatmul.mubr.f32.gmra.mxu0 %v854
    %v925 = vpop.f32.mrf.mxu0
    %v926 = vadd.f32 %v518, %v925
    %v927 = vpop.f32.mrf.mxu0
    %928 = vmatprep.mubr.f32.mxu0 0.0
    %929 = vmatmul.mubr.f32.gmra.mxu0 %v857
    %v930 = vpop.f32.mrf.mxu0
    %v931 = vadd.f32 %v523, %v930
    %v932 = vpop.f32.mrf.mxu0
    %933 = vdwg.mxu0
    %936 = vrot.lane.b32.xlu0 %v639, 64
    %v937 = vpop.permute.xlu0 %936
    %938 = vrot.lane.b32.xlu0 %v640, 64
    %v939 = vpop.permute.xlu0 %938
    %v943 = vsel %vm293, %v633, 0
    %v946 = vsel %vm293, %v634, 0
    %948 = vmatprep.subr.mxu0 0.0
    %949 = vmatpush1.msra.mxu0 0.0
    %950 = vmatprep.subr.mxu0 0.0
    %951 = vmatpush1.msra.mxu0 0.0
    %952 = vmatprep.subr.mxu0 0.0
    %953 = vmatpush1.msra.mxu0 0.0
    %954 = vmatprep.subr.mxu0 0.0
    %955 = vmatpush1.msra.mxu0 0.0
    %956 = vmatprep.subr.mxu0 0.0
    %957 = vmatpush1.msra.mxu0 0.0
    %958 = vmatprep.subr.mxu0 0.0
    %959 = vmatpush1.msra.mxu0 0.0
    %960 = vmatprep.subr.mxu0 0.0
    %961 = vmatpush1.msra.mxu0 0.0
    %962 = vmatprep.subr.mxu0 0.0
    %963 = vmatpush1.msra.mxu0 0.0
    %964 = vmatprep.subr.mxu0 0.0
    %965 = vmatpush1.msra.mxu0 0.0
    %966 = vmatprep.subr.mxu0 0.0
    %967 = vmatpush1.msra.mxu0 0.0
    %968 = vmatprep.subr.mxu0 0.0
    %969 = vmatpush1.msra.mxu0 0.0
    %970 = vmatprep.subr.mxu0 0.0
    %971 = vmatpush1.msra.mxu0 0.0
    %972 = vmatprep.subr.mxu0 0.0
    %973 = vmatpush1.msra.mxu0 0.0
    %974 = vmatprep.subr.mxu0 0.0
    %975 = vmatpush1.msra.mxu0 0.0
    %976 = vmatprep.subr.mxu0 0.0
    %977 = vmatpush1.msra.mxu0 %v939
    %978 = vmatprep.subr.mxu0 0.0
    %979 = vmatpush1.msra.mxu0 %v937
    %980 = vmatprep.subr.mxu0 0.0
    %981 = vmatpush2.msra.mxu0 0.0
    %982 = vmatprep.subr.mxu0 0.0
    %983 = vmatpush2.msra.mxu0 0.0
    %984 = vmatprep.subr.mxu0 0.0
    %985 = vmatpush2.msra.mxu0 0.0
    %986 = vmatprep.subr.mxu0 0.0
    %987 = vmatpush2.msra.mxu0 0.0
    %988 = vmatprep.subr.mxu0 0.0
    %989 = vmatpush2.msra.mxu0 0.0
    %990 = vmatprep.subr.mxu0 0.0
    %991 = vmatpush2.msra.mxu0 0.0
    %992 = vmatprep.subr.mxu0 0.0
    %993 = vmatpush2.msra.mxu0 0.0
    %994 = vmatprep.subr.mxu0 0.0
    %995 = vmatpush2.msra.mxu0 0.0
    %996 = vmatprep.subr.mxu0 0.0
    %997 = vmatpush2.msra.mxu0 0.0
    %998 = vmatprep.subr.mxu0 0.0
    %999 = vmatpush2.msra.mxu0 0.0
    %1000 = vmatprep.subr.mxu0 0.0
    %1001 = vmatpush2.msra.mxu0 0.0
    %1002 = vmatprep.subr.mxu0 0.0
    %1003 = vmatpush2.msra.mxu0 0.0
    %1004 = vmatprep.subr.mxu0 0.0
    %1005 = vmatpush2.msra.mxu0 0.0
    %1006 = vmatprep.subr.mxu0 0.0
    %1007 = vmatpush2.msra.mxu0 0.0
    %1008 = vmatprep.subr.mxu0 0.0
    %1009 = vmatpush2.msra.mxu0 0.0
    %1010 = vmatprep.subr.mxu0 0.0
    %1011 = vmatpush2.msra.mxu0 0.0
    %1012 = vmatprep.mubr.f32.mxu0 0.0
    %1013 = vmatmul.mubr.f32.gmra.mxu0 %v943
    %v1014 = vpop.f32.mrf.mxu0
    %v1015 = vadd.f32 %v837, %v1014
    %v1016 = vpop.f32.mrf.mxu0
    %1017 = vmatprep.mubr.f32.mxu0 0.0
    %1018 = vmatmul.mubr.f32.gmra.mxu0 %v946
    %v1019 = vpop.f32.mrf.mxu0
    %v1020 = vadd.f32 %v842, %v1019
    %v1021 = vpop.f32.mrf.mxu0
    %1022 = vdwg.mxu0
    %v1023 = vadd.f32 %v926, %v1015
    %v1024 = vadd.f32 %v931, %v1020
    %v1025 = vld [vmem:[%s7] sm:$0xff]
    %v1026 = vld [vmem:[%s7 + $0x8] sm:$0xff]
    %v1027 = vld [vmem:[%s7 + $0x10] sm:$0xff]
    %v1028 = vld [vmem:[%s7 + $0x18] sm:$0xff]
    %v1029 = vld [vmem:[%s8] sm:$0x1]
    %v1031 = vlaneseq
    %v1032 = vshrl.u32 %v1031, 7
    %v1033 = vsub.s32 0, %v1032
    %v1034 = vrot.slane %v1029, %v1033
    %v1037 = vsel %vm55, %v1023, 0
    %v1040 = vsel %vm55, %v1024, 0
    %1042 = vmatprep.subr.mxu0 0.0
    %1043 = vmatpush1.msra.mxu0 0.0
    %1044 = vmatprep.subr.mxu0 0.0
    %1045 = vmatpush1.msra.mxu0 0.0
    %1046 = vmatprep.subr.mxu0 0.0
    %1047 = vmatpush1.msra.mxu0 0.0
    %1048 = vmatprep.subr.mxu0 0.0
    %1049 = vmatpush1.msra.mxu0 0.0
    %1050 = vmatprep.subr.mxu0 0.0
    %1051 = vmatpush1.msra.mxu0 0.0
    %1052 = vmatprep.subr.mxu0 0.0
    %1053 = vmatpush1.msra.mxu0 0.0
    %1054 = vmatprep.subr.mxu0 0.0
    %1055 = vmatpush1.msra.mxu0 0.0
    %1056 = vmatprep.subr.mxu0 0.0
    %1057 = vmatpush1.msra.mxu0 0.0
    %1058 = vmatprep.subr.mxu0 0.0
    %1059 = vmatpush1.msra.mxu0 0.0
    %1060 = vmatprep.subr.mxu0 0.0
    %1061 = vmatpush1.msra.mxu0 0.0
    %1062 = vmatprep.subr.mxu0 0.0
    %1063 = vmatpush1.msra.mxu0 0.0
    %1064 = vmatprep.subr.mxu0 0.0
    %1065 = vmatpush1.msra.mxu0 0.0
    %1066 = vmatprep.subr.mxu0 0.0
    %1067 = vmatpush1.msra.mxu0 %v1028
    %1068 = vmatprep.subr.mxu0 0.0
    %1069 = vmatpush1.msra.mxu0 %v1027
    %1070 = vmatprep.subr.mxu0 0.0
    %1071 = vmatpush1.msra.mxu0 %v1026
    %1072 = vmatprep.subr.mxu0 0.0
    %1073 = vmatpush1.msra.mxu0 %v1025
    %1074 = vmatprep.subr.mxu0 0.0
    %1075 = vmatpush2.msra.mxu0 0.0
    %1076 = vmatprep.subr.mxu0 0.0
    %1077 = vmatpush2.msra.mxu0 0.0
    %1078 = vmatprep.subr.mxu0 0.0
    %1079 = vmatpush2.msra.mxu0 0.0
    %1080 = vmatprep.subr.mxu0 0.0
    %1081 = vmatpush2.msra.mxu0 0.0
    %1082 = vmatprep.subr.mxu0 0.0
    %1083 = vmatpush2.msra.mxu0 0.0
    %1084 = vmatprep.subr.mxu0 0.0
    %1085 = vmatpush2.msra.mxu0 0.0
    %1086 = vmatprep.subr.mxu0 0.0
    %1087 = vmatpush2.msra.mxu0 0.0
    %1088 = vmatprep.subr.mxu0 0.0
    %1089 = vmatpush2.msra.mxu0 0.0
    %1090 = vmatprep.subr.mxu0 0.0
    %1091 = vmatpush2.msra.mxu0 0.0
    %1092 = vmatprep.subr.mxu0 0.0
    %1093 = vmatpush2.msra.mxu0 0.0
    %1094 = vmatprep.subr.mxu0 0.0
    %1095 = vmatpush2.msra.mxu0 0.0
    %1096 = vmatprep.subr.mxu0 0.0
    %1097 = vmatpush2.msra.mxu0 0.0
    %1098 = vmatprep.subr.mxu0 0.0
    %1099 = vmatpush2.msra.mxu0 0.0
    %1100 = vmatprep.subr.mxu0 0.0
    %1101 = vmatpush2.msra.mxu0 0.0
    %1102 = vmatprep.subr.mxu0 0.0
    %1103 = vmatpush2.msra.mxu0 0.0
    %1104 = vmatprep.subr.mxu0 0.0
    %1105 = vmatpush2.msra.mxu0 0.0
    %1106 = vmatprep.mubr.f32.mxu0 0.0
    %1107 = vmatmul.mubr.f32.gmra.mxu0 %v1037
    %v1108 = vpop.f32.mrf.mxu0
    %v1109 = vadd.f32 %v1034, %v1108
    %v1110 = vpop.f32.mrf.mxu0
    %1111 = vmatprep.mubr.f32.mxu0 0.0
    %1112 = vmatmul.mubr.f32.gmra.mxu0 %v1040
    %v1113 = vpop.f32.mrf.mxu0
    %v1114 = vadd.f32 %v1034, %v1113
    %v1115 = vpop.f32.mrf.mxu0
    %1116 = vdwg.mxu0
    %v1117 = vadd.f32 %v51, %v1109
    %v1118 = vadd.f32 %v52, %v1114
    %v1119 = vld [vmem:[%s9] sm:$0x1]
    %v1120 = vld [vmem:[%s10] sm:$0x1]
    %v1121 = vsel %vm55, %v1117, 0.0
    %1122 = vadd.xlane.f32.xlu0 %v1121
    %v1123 = vpop.xlane.xlu0 %1122
    %v1124 = vsel %vm55, %v1118, 0.0
    %1125 = vadd.xlane.f32.xlu0 %v1124
    %v1126 = vpop.xlane.xlu0 %1125
    %v1127 = vmul.f32 %v1123, %v62
    %v1128 = vmul.f32 %v1126, %v62
    %v1129 = vsub.f32 %v1117, %v1127
    %v1130 = vsub.f32 %v1118, %v1128
    %v1131 = vmul.f32 %v1129, %v1129
    %v1132 = vmul.f32 %v1130, %v1130
    %v1133 = vsel %vm55, %v1131, 0.0
    %1134 = vadd.xlane.f32.xlu0 %v1133
    %v1135 = vpop.xlane.xlu0 %1134
    %v1136 = vsel %vm55, %v1132, 0.0
    %1137 = vadd.xlane.f32.xlu0 %v1136
    %v1138 = vpop.xlane.xlu0 %1137
    %v1139 = vmul.f32 %v1135, %v62
    %v1140 = vmul.f32 %v1138, %v62
    %v1141 = vadd.f32 %v1139, 1e-05
    %v1142 = vadd.f32 %v1140, 1e-05
    %v1143 = vrsqrt.pop %v1141
    %v1144 = vrsqrt.pop %v1142
    %v1145 = vmul.f32 %v1129, %v1143
    %v1146 = vmul.f32 %v1130, %v1144
    %v1148 = vlaneseq
    %v1149 = vshrl.u32 %v1148, 7
    %v1150 = vsub.s32 0, %v1149
    %v1151 = vrot.slane %v1119, %v1150
    %v1153 = vmul.f32 %v1145, %v1151
    %v1154 = vmul.f32 %v1146, %v1151
    %v1156 = vlaneseq
    %v1157 = vshrl.u32 %v1156, 7
    %v1158 = vsub.s32 0, %v1157
    %v1159 = vrot.slane %v1120, %v1158
    %v1161 = vadd.f32 %v1153, %v1159
    %v1162 = vadd.f32 %v1154, %v1159
    %v1163 = vld [vmem:[%s11] sm:$0xff]
    %v1164 = vld [vmem:[%s11 + $0x8] sm:$0xff]
    %v1165 = vld [vmem:[%s11 + $0x10] sm:$0xff]
    %v1166 = vld [vmem:[%s11 + $0x18] sm:$0xff]
    %v1167 = vld [vmem:[%s12] sm:$0x1]
    %v1169 = vlaneseq
    %v1170 = vshrl.u32 %v1169, 7
    %v1171 = vsub.s32 0, %v1170
    %v1172 = vrot.slane %v1167, %v1171
    %v1175 = vsel %vm55, %v1161, 0
    %v1178 = vsel %vm55, %v1162, 0
    %1180 = vmatprep.subr.mxu0 0.0
    %1181 = vmatpush1.msra.mxu0 0.0
    %1182 = vmatprep.subr.mxu0 0.0
    %1183 = vmatpush1.msra.mxu0 0.0
    %1184 = vmatprep.subr.mxu0 0.0
    %1185 = vmatpush1.msra.mxu0 0.0
    %1186 = vmatprep.subr.mxu0 0.0
    %1187 = vmatpush1.msra.mxu0 0.0
    %1188 = vmatprep.subr.mxu0 0.0
    %1189 = vmatpush1.msra.mxu0 0.0
    %1190 = vmatprep.subr.mxu0 0.0
    %1191 = vmatpush1.msra.mxu0 0.0
    %1192 = vmatprep.subr.mxu0 0.0
    %1193 = vmatpush1.msra.mxu0 0.0
    %1194 = vmatprep.subr.mxu0 0.0
    %1195 = vmatpush1.msra.mxu0 0.0
    %1196 = vmatprep.subr.mxu0 0.0
    %1197 = vmatpush1.msra.mxu0 0.0
    %1198 = vmatprep.subr.mxu0 0.0
    %1199 = vmatpush1.msra.mxu0 0.0
    %1200 = vmatprep.subr.mxu0 0.0
    %1201 = vmatpush1.msra.mxu0 0.0
    %1202 = vmatprep.subr.mxu0 0.0
    %1203 = vmatpush1.msra.mxu0 0.0
    %1204 = vmatprep.subr.mxu0 0.0
    %1205 = vmatpush1.msra.mxu0 %v1166
    %1206 = vmatprep.subr.mxu0 0.0
    %1207 = vmatpush1.msra.mxu0 %v1165
    %1208 = vmatprep.subr.mxu0 0.0
    %1209 = vmatpush1.msra.mxu0 %v1164
    %1210 = vmatprep.subr.mxu0 0.0
    %1211 = vmatpush1.msra.mxu0 %v1163
    %1212 = vmatprep.subr.mxu0 0.0
    %1213 = vmatpush2.msra.mxu0 0.0
    %1214 = vmatprep.subr.mxu0 0.0
    %1215 = vmatpush2.msra.mxu0 0.0
    %1216 = vmatprep.subr.mxu0 0.0
    %1217 = vmatpush2.msra.mxu0 0.0
    %1218 = vmatprep.subr.mxu0 0.0
    %1219 = vmatpush2.msra.mxu0 0.0
    %1220 = vmatprep.subr.mxu0 0.0
    %1221 = vmatpush2.msra.mxu0 0.0
    %1222 = vmatprep.subr.mxu0 0.0
    %1223 = vmatpush2.msra.mxu0 0.0
    %1224 = vmatprep.subr.mxu0 0.0
    %1225 = vmatpush2.msra.mxu0 0.0
    %1226 = vmatprep.subr.mxu0 0.0
    %1227 = vmatpush2.msra.mxu0 0.0
    %1228 = vmatprep.subr.mxu0 0.0
    %1229 = vmatpush2.msra.mxu0 0.0
    %1230 = vmatprep.subr.mxu0 0.0
    %1231 = vmatpush2.msra.mxu0 0.0
    %1232 = vmatprep.subr.mxu0 0.0
    %1233 = vmatpush2.msra.mxu0 0.0
    %1234 = vmatprep.subr.mxu0 0.0
    %1235 = vmatpush2.msra.mxu0 0.0
    %1236 = vmatprep.subr.mxu0 0.0
    %1237 = vmatpush2.msra.mxu0 0.0
    %1238 = vmatprep.subr.mxu0 0.0
    %1239 = vmatpush2.msra.mxu0 0.0
    %1240 = vmatprep.subr.mxu0 0.0
    %1241 = vmatpush2.msra.mxu0 0.0
    %1242 = vmatprep.subr.mxu0 0.0
    %1243 = vmatpush2.msra.mxu0 0.0
    %1244 = vmatprep.mubr.f32.mxu0 0.0
    %1245 = vmatmul.mubr.f32.gmra.mxu0 %v1175
    %v1246 = vpop.f32.mrf.mxu0
    %v1247 = vadd.f32 %v1172, %v1246
    %v1248 = vpop.f32.mrf.mxu0
    %1249 = vmatprep.mubr.f32.mxu0 0.0
    %1250 = vmatmul.mubr.f32.gmra.mxu0 %v1178
    %v1251 = vpop.f32.mrf.mxu0
    %v1252 = vadd.f32 %v1172, %v1251
    %v1253 = vpop.f32.mrf.mxu0
    %1254 = vdwg.mxu0
    %v1255 = vmul.f32 %v1247, 0.5
    %v1256 = vmul.f32 %v1252, 0.5
    %v1257 = vmul.f32 %v1247, 0.70710677
    %v1258 = vmul.f32 %v1252, 0.70710677
    %v1259 = verf.f32.pop %v1257
    %v1260 = verf.f32.pop %v1258
    %v1261 = vadd.f32 %v1259, 1.0
    %v1262 = vadd.f32 %v1260, 1.0
    %v1263 = vmul.f32 %v1255, %v1261
    %v1264 = vmul.f32 %v1256, %v1262
    %v1265 = vld [vmem:[%s13] sm:$0xff]
    %v1266 = vld [vmem:[%s13 + $0x8] sm:$0xff]
    %v1267 = vld [vmem:[%s13 + $0x10] sm:$0xff]
    %v1268 = vld [vmem:[%s13 + $0x18] sm:$0xff]
    %v1269 = vld [vmem:[%s13 + $0x20] sm:$0xff]
    %v1270 = vld [vmem:[%s13 + $0x28] sm:$0xff]
    %v1271 = vld [vmem:[%s13 + $0x30] sm:$0xff]
    %v1272 = vld [vmem:[%s13 + $0x38] sm:$0xff]
    %v1273 = vld [vmem:[%s13 + $0x40] sm:$0xff]
    %v1274 = vld [vmem:[%s13 + $0x48] sm:$0xff]
    %v1275 = vld [vmem:[%s13 + $0x50] sm:$0xff]
    %v1276 = vld [vmem:[%s13 + $0x58] sm:$0xff]
    %v1277 = vld [vmem:[%s13 + $0x60] sm:$0xff]
    %v1278 = vld [vmem:[%s13 + $0x68] sm:$0xff]
    %v1279 = vld [vmem:[%s13 + $0x70] sm:$0xff]
    %v1280 = vld [vmem:[%s13 + $0x78] sm:$0xff]
    %v1281 = vld [vmem:[%s14] sm:$0x1]
    %v1283 = vlaneseq
    %v1284 = vshrl.u32 %v1283, 7
    %v1285 = vsub.s32 0, %v1284
    %v1286 = vrot.slane %v1281, %v1285
    %1288 = vmatprep.subr.mxu0 0.0
    %1289 = vmatpush1.msra.mxu0 %v1280
    %1290 = vmatprep.subr.mxu0 0.0
    %1291 = vmatpush1.msra.mxu0 %v1279
    %1292 = vmatprep.subr.mxu0 0.0
    %1293 = vmatpush1.msra.mxu0 %v1278
    %1294 = vmatprep.subr.mxu0 0.0
    %1295 = vmatpush1.msra.mxu0 %v1277
    %1296 = vmatprep.subr.mxu0 0.0
    %1297 = vmatpush1.msra.mxu0 %v1276
    %1298 = vmatprep.subr.mxu0 0.0
    %1299 = vmatpush1.msra.mxu0 %v1275
    %1300 = vmatprep.subr.mxu0 0.0
    %1301 = vmatpush1.msra.mxu0 %v1274
    %1302 = vmatprep.subr.mxu0 0.0
    %1303 = vmatpush1.msra.mxu0 %v1273
    %1304 = vmatprep.subr.mxu0 0.0
    %1305 = vmatpush1.msra.mxu0 %v1272
    %1306 = vmatprep.subr.mxu0 0.0
    %1307 = vmatpush1.msra.mxu0 %v1271
    %1308 = vmatprep.subr.mxu0 0.0
    %1309 = vmatpush1.msra.mxu0 %v1270
    %1310 = vmatprep.subr.mxu0 0.0
    %1311 = vmatpush1.msra.mxu0 %v1269
    %1312 = vmatprep.subr.mxu0 0.0
    %1313 = vmatpush1.msra.mxu0 %v1268
    %1314 = vmatprep.subr.mxu0 0.0
    %1315 = vmatpush1.msra.mxu0 %v1267
    %1316 = vmatprep.subr.mxu0 0.0
    %1317 = vmatpush1.msra.mxu0 %v1266
    %1318 = vmatprep.subr.mxu0 0.0
    %1319 = vmatpush1.msra.mxu0 %v1265
    %1320 = vmatprep.subr.mxu0 0.0
    %1321 = vmatpush2.msra.mxu0 0.0
    %1322 = vmatprep.subr.mxu0 0.0
    %1323 = vmatpush2.msra.mxu0 0.0
    %1324 = vmatprep.subr.mxu0 0.0
    %1325 = vmatpush2.msra.mxu0 0.0
    %1326 = vmatprep.subr.mxu0 0.0
    %1327 = vmatpush2.msra.mxu0 0.0
    %1328 = vmatprep.subr.mxu0 0.0
    %1329 = vmatpush2.msra.mxu0 0.0
    %1330 = vmatprep.subr.mxu0 0.0
    %1331 = vmatpush2.msra.mxu0 0.0
    %1332 = vmatprep.subr.mxu0 0.0
    %1333 = vmatpush2.msra.mxu0 0.0
    %1334 = vmatprep.subr.mxu0 0.0
    %1335 = vmatpush2.msra.mxu0 0.0
    %1336 = vmatprep.subr.mxu0 0.0
    %1337 = vmatpush2.msra.mxu0 0.0
    %1338 = vmatprep.subr.mxu0 0.0
    %1339 = vmatpush2.msra.mxu0 0.0
    %1340 = vmatprep.subr.mxu0 0.0
    %1341 = vmatpush2.msra.mxu0 0.0
    %1342 = vmatprep.subr.mxu0 0.0
    %1343 = vmatpush2.msra.mxu0 0.0
    %1344 = vmatprep.subr.mxu0 0.0
    %1345 = vmatpush2.msra.mxu0 0.0
    %1346 = vmatprep.subr.mxu0 0.0
    %1347 = vmatpush2.msra.mxu0 0.0
    %1348 = vmatprep.subr.mxu0 0.0
    %1349 = vmatpush2.msra.mxu0 0.0
    %1350 = vmatprep.subr.mxu0 0.0
    %1351 = vmatpush2.msra.mxu0 0.0
    %1352 = vmatprep.mubr.f32.mxu0 0.0
    %1353 = vmatmul.mubr.f32.gmra.mxu0 %v1263
    %v1354 = vpop.f32.mrf.mxu0
    %v1355 = vadd.f32 %v1286, %v1354
    %v1356 = vpop.f32.mrf.mxu0
    %1357 = vmatprep.mubr.f32.mxu0 0.0
    %1358 = vmatmul.mubr.f32.gmra.mxu0 %v1264
    %v1359 = vpop.f32.mrf.mxu0
    %v1360 = vadd.f32 %v1286, %v1359
    %v1361 = vpop.f32.mrf.mxu0
    %1362 = vdwg.mxu0
    %v1363 = vadd.f32 %v1117, %v1355
    %v1364 = vadd.f32 %v1118, %v1360
    %1365 = vst.msk [vmem:[#allocation2] sm:$0xff] %vm55, %v1363
    %1366 = vst.msk [vmem:[#allocation2 + $0x8] sm:$0xff] %vm55, %v1364
    // Predicated region
    $region62: #{tpu_custom_call.1} parent=1 // pred_check
      _
    $region63: #{tpu_custom_call.1} parent=1 // pred_check_branch
      %1368 = sbr.rel (0) target = $region65
    $region64: #{tpu_custom_call.1} parent=1 // pred_region
      %s1370 = ssub.s32 256, 256
      %1371 = vsyncadd [#allocation3], %s1370
      %s1372 = sshll.u32 [#allocation2], 4
      %s1373 = int_to_ptr.vmem [resolvable:$true] %s1372
      %1378 = dma.vmem_to_hbm [thread:$0]  %s1373, 256, %s15, [#allocation3], 128, 128, 8
    $region65: #{tpu_custom_call.1} parent=1 // pred_fallthru
      _
    // Predicated region
    $region66: #{tpu_custom_call.1} parent=1 // pred_check
      _
    $region67: #{tpu_custom_call.1} parent=1 // pred_check_branch
      %1380 = sbr.rel (0) target = $region69
    $region68: #{tpu_custom_call.1} parent=1 // pred_region
      %1381 = dma.done [#allocation3], 256
    $region69: #{tpu_custom_call.1} parent=1 // pred_fallthru
      _
    %1382 = vsyncpa [#allocation3], 1

</llo_original>
